<compile_context>
chip_gen: v7x
topology: tpu7x:2x2x1
jax: 0.10.0
libtpu: 0.0.40
codegen_flags: <defaults>
</compile_context>

<pallas_src>
import functools

import jax
import jax.numpy as jnp
from jax import lax
from jax.experimental import pallas as pl
from jax.experimental.pallas import tpu as pltpu

# Architecture constants fixed by the PyTorch module definition.
CONV1_OUT, CONV1_K, CONV1_S = 16, 8, 4
CONV2_OUT, CONV2_K, CONV2_S = 32, 4, 2
FC1_OUT, FC2_OUT = 256, 512
LANE = 128
VMEM_LIMIT_BYTES = 32 * 1024 * 1024   # safe on v5e/v6e/v7x; >> actual need


def _round_up(x, m):
    return (x + m - 1) // m * m


# ----------------------------------------------------------------------------
# Kernel A: conv1 as im2col matmul, y = relu(patches @ w + b), M-tiled grid.
# bf16 operands, f32 accumulation, 16-wide bf16 output (no lane padding).
# ----------------------------------------------------------------------------
def _conv1_matmul_kernel(p_ref, w_ref, b_ref, o_ref):
    y = jnp.dot(p_ref[...], w_ref[...], preferred_element_type=jnp.float32)
    o_ref[...] = jnp.maximum(y + b_ref[...], 0.0).astype(o_ref.dtype)


def conv1_matmul(patches, w, b, *, block_m=1024):
    """relu(patches @ w + b).  patches:(M,K) bf16, w:(K,16) bf16 -> (M,16) bf16."""
    M, K = patches.shape
    n_out = w.shape[1]
    tm = min(block_m, M)                 # tm==M (full dim) or multiple of 8
    grid = (pl.cdiv(M, tm),)
    cost = pl.CostEstimate(
        flops=2 * M * K * n_out,
        transcendentals=0,
        bytes_accessed=2 * (M * K + K * n_out + M * n_out) + 4 * n_out,
    )
    return pl.pallas_call(
        _conv1_matmul_kernel,
        out_shape=jax.ShapeDtypeStruct((M, n_out), jnp.bfloat16),
        grid=grid,
        in_specs=[
            pl.BlockSpec((tm, K), lambda i: (i, 0)),
            pl.BlockSpec((K, n_out), lambda i: (0, 0)),
            pl.BlockSpec((1, n_out), lambda i: (0, 0)),
        ],
        out_specs=pl.BlockSpec((tm, n_out), lambda i: (i, 0)),
        compiler_params=pltpu.CompilerParams(
            dimension_semantics=("parallel",),
            vmem_limit_bytes=VMEM_LIMIT_BYTES),
        cost_estimate=cost,
    )(patches, w, b)


# ----------------------------------------------------------------------------
# Kernel B: conv2 + flatten + fc1 + fc2 + fc3 fused, batch-tiled grid.
#
# p2:  (nb, n_spatial*K2)  conv2 im2col patches, positions concatenated along
#      features (the natural contiguous reshape of the NHWC patch tensor).
# w2b: (n_spatial*K2, c2p) block-diagonal conv2 weight -> conv2 for ALL
#      positions is one dense matmul; output lane l = p*32 + c.
# wf1: (c2p, 256) fc1 weight permuted to that packed lane order, so the torch
#      NCHW flatten is free and fc1 is one dense (tb,128)@(128,256) matmul.
# ----------------------------------------------------------------------------
def _conv2_fc_fused_kernel(p2_ref, w2_ref, b2_ref, wf1_ref, bf1_ref,
                           wf2_ref, bf2_ref, wf3_ref, bf3_ref, o_ref):
    y2 = jnp.dot(p2_ref[...], w2_ref[...], preferred_element_type=jnp.float32)
    y2 = jnp.maximum(y2 + b2_ref[...], 0.0)                  # conv2 + ReLU
    h1 = jnp.dot(y2.astype(jnp.bfloat16), wf1_ref[...],
                 preferred_element_type=jnp.float32)
    h1 = jnp.maximum(h1 + bf1_ref[...], 0.0)                 # fc1 + ReLU
    h2 = jnp.dot(h1.astype(jnp.bfloat16), wf2_ref[...],
                 preferred_element_type=jnp.float32)
    h2 = jnp.maximum(h2 + bf2_ref[...], 0.0)                 # fc2 + ReLU
    o_ref[...] = (jnp.dot(h2.astype(jnp.bfloat16), wf3_ref[...],
                          preferred_element_type=jnp.float32)
                  + bf3_ref[...])                            # fc3


def conv2_fc_fused(p2, w2b, b2b, wf1, bf1, wf2, bf2, wf3, bf3, *, block_b=128):
    nb, kp = p2.shape
    c2p = w2b.shape[1]
    nap = wf3.shape[1]
    tb = min(block_b, nb)
    grid = (pl.cdiv(nb, tb),)
    flops = 2 * nb * (kp * c2p + c2p * FC1_OUT + FC1_OUT * FC2_OUT
                      + FC2_OUT * nap)
    weights = (w2b, wf1, wf2, wf3)
    biases = (b2b, bf1, bf2, bf3)
    bytes_accessed = (2 * (int(p2.size) + sum(int(a.size) for a in weights))
                      + 4 * (sum(int(a.size) for a in biases) + nb * nap))
    const = lambda i: (0, 0)
    return pl.pallas_call(
        _conv2_fc_fused_kernel,
        out_shape=jax.ShapeDtypeStruct((nb, nap), jnp.float32),
        grid=grid,
        in_specs=[
            pl.BlockSpec((tb, kp), lambda i: (i, 0)),
            pl.BlockSpec(w2b.shape, const),
            pl.BlockSpec(b2b.shape, const),
            pl.BlockSpec(wf1.shape, const),
            pl.BlockSpec(bf1.shape, const),
            pl.BlockSpec(wf2.shape, const),
            pl.BlockSpec(bf2.shape, const),
            pl.BlockSpec(wf3.shape, const),
            pl.BlockSpec(bf3.shape, const),
        ],
        out_specs=pl.BlockSpec((tb, nap), lambda i: (i, 0)),
        compiler_params=pltpu.CompilerParams(
            dimension_semantics=("parallel",),
            vmem_limit_bytes=VMEM_LIMIT_BYTES),
        cost_estimate=pl.CostEstimate(flops=flops, transcendentals=0,
                                      bytes_accessed=bytes_accessed),
    )(p2, w2b, b2b, wf1, bf1, wf2, bf2, wf3, bf3)


# ----------------------------------------------------------------------------
# One-time parameter preprocessing (outside the jitted forward).
# ----------------------------------------------------------------------------
def prepare_params(params, obs_shape, num_actions):
    _, h, w = obs_shape
    oh1 = (h - CONV1_K) // CONV1_S + 1
    ow1 = (w - CONV1_K) // CONV1_S + 1
    oh2 = (oh1 - CONV2_K) // CONV2_S + 1
    ow2 = (ow1 - CONV2_K) // CONV2_S + 1
    n_spatial = oh2 * ow2
    k2 = CONV1_OUT * CONV2_K * CONV2_K            # conv2 im2col feature size
    c2_packed = n_spatial * CONV2_OUT             # == torch fc_size
    c2p = _round_up(c2_packed, LANE)              # 128 for 28x28 inputs
    nap = _round_up(num_actions, LANE)

    f32, bf16 = jnp.float32, jnp.bfloat16

    # conv1 im2col weight, rows ordered (c, kh, kw); 1/255 scale folded in.
    w1 = params["conv1_w"].astype(f32).reshape(CONV1_OUT, -1).T / 255.0
    b1 = params["conv1_b"].astype(f32).reshape(1, CONV1_OUT)

    # conv2 block-diagonal over the n_spatial output positions: one dense
    # matmul computes all positions, output lanes packed in (position, channel)
    # order l = p*32 + c.
    w2 = params["conv2_w"].astype(f32).reshape(CONV2_OUT, -1).T   # (k2, 32)
    w2b = jnp.zeros((n_spatial * k2, c2p), f32)
    for p in range(n_spatial):
        w2b = w2b.at[p * k2:(p + 1) * k2,
                     p * CONV2_OUT:(p + 1) * CONV2_OUT].set(w2)
    b2b = jnp.zeros((1, c2p), f32).at[0, :c2_packed].set(
        jnp.tile(params["conv2_b"].astype(f32), n_spatial))

    # fc1: torch flattens the conv latent in (channel, oh, ow) order, i.e.
    # column index c*n_spatial + p.  Permute rows to the packed (p, c) lane
    # order used by w2b above; pad rows to c2p (padded lanes are zero).
    wf1 = params["fc1_w"].astype(f32).reshape(FC1_OUT, CONV2_OUT, n_spatial)
    wf1 = wf1.transpose(2, 1, 0).reshape(c2_packed, FC1_OUT)
    wf1p = jnp.zeros((c2p, FC1_OUT), f32).at[:c2_packed, :].set(wf1)

    return {
        "w1": w1.astype(bf16),
        "b1": b1,
        "w2b": w2b.astype(bf16),
        "b2b": b2b,
        "wf1": wf1p.astype(bf16),
        "bf1": params["fc1_b"].astype(f32).reshape(1, FC1_OUT),
        "wf2": params["fc2_w"].astype(f32).T.astype(bf16),
        "bf2": params["fc2_b"].astype(f32).reshape(1, FC2_OUT),
        "wf3": jnp.zeros((FC2_OUT, nap), f32).at[:, :num_actions].set(
            params["fc3_w"].astype(f32).T).astype(bf16),
        "bf3": jnp.zeros((1, nap), f32).at[0, :num_actions].set(
            params["fc3_b"].astype(f32)),
    }


# ----------------------------------------------------------------------------
# Forward pass equivalent to ConvModel.forward
# ----------------------------------------------------------------------------
@functools.partial(jax.jit, static_argnames=("num_actions",))
def conv_model_forward(prepped, x, *, num_actions):
    n = x.shape[0]

    # conv1 patches: bf16 NCHW input -> bf16 NHWC patch tensor, features
    # ordered (c, kh, kw) (matches torch Conv2d weight.reshape(out_c, -1)).
    p1 = lax.conv_general_dilated_patches(
        x.astype(jnp.bfloat16), (CONV1_K, CONV1_K), (CONV1_S, CONV1_S),
        "VALID", dimension_numbers=("NCHW", "OIHW", "NHWC"))
    _, oh1, ow1, k1 = p1.shape
    y1 = conv1_matmul(p1.reshape(n * oh1 * ow1, k1),
                      prepped["w1"], prepped["b1"])           # (M, 16) bf16
    y1 = y1.reshape(n, oh1, ow1, CONV1_OUT)                   # NHWC, free

    # conv2 patches; the contiguous (n, oh2*ow2*k2) reshape is already the
    # packed (position, feature) layout kernel B's block-diagonal weight
    # expects -- no transpose, no per-position regrouping.
    p2 = lax.conv_general_dilated_patches(
        y1, (CONV2_K, CONV2_K), (CONV2_S, CONV2_S), "VALID",
        dimension_numbers=("NHWC", "HWIO", "NHWC"))
    _, oh2, ow2, k2 = p2.shape
    p2 = p2.reshape(n, oh2 * ow2 * k2)
    nb = _round_up(n, 8)
    if nb != n:                                   # sublane-pad tiny batches
        p2 = jnp.pad(p2, ((0, nb - n), (0, 0)))

    q = conv2_fc_fused(p2, prepped["w2b"], prepped["b2b"],
                       prepped["wf1"], prepped["bf1"],
                       prepped["wf2"], prepped["bf2"],
                       prepped["wf3"], prepped["bf3"])
    return q[:n, :num_actions]


# ----------------------------------------------------------------------------
# Parameter init (PyTorch layouts) and a pure-JAX f32 reference for validation.
# ----------------------------------------------------------------------------
def init_params(key, obs_shape, num_actions):
    c, h, w = obs_shape
    oh1 = (h - CONV1_K) // CONV1_S + 1
    ow1 = (w - CONV1_K) // CONV1_S + 1
    oh2 = (oh1 - CONV2_K) // CONV2_S + 1
    ow2 = (ow1 - CONV2_K) // CONV2_S + 1
    fc_size = CONV2_OUT * oh2 * ow2

    ks = jax.random.split(key, 10)
    s = 0.05
    params = {
        "conv1_w": jax.random.normal(ks[0], (CONV1_OUT, c, CONV1_K, CONV1_K),
                                     jnp.float32) * s,
        "conv1_b": jax.random.normal(ks[1], (CONV1_OUT,), jnp.float32) * s,
        "conv2_w": jax.random.normal(ks[2], (CONV2_OUT, CONV1_OUT, CONV2_K,
                                             CONV2_K), jnp.float32) * s,
        "conv2_b": jax.random.normal(ks[3], (CONV2_OUT,), jnp.float32) * s,
        # PyTorch Linear weights are (out_features, in_features)
        "fc1_w": jax.random.normal(ks[4], (FC1_OUT, fc_size), jnp.float32) * s,
        "fc1_b": jax.random.normal(ks[5], (FC1_OUT,), jnp.float32) * s,
        "fc2_w": jax.random.normal(ks[6], (FC2_OUT, FC1_OUT), jnp.float32) * s,
        "fc2_b": jax.random.normal(ks[7], (FC2_OUT,), jnp.float32) * s,
        "fc3_w": jax.random.normal(ks[8], (num_actions, FC2_OUT),
                                   jnp.float32) * s,
        "fc3_b": jax.random.normal(ks[9], (num_actions,), jnp.float32) * s,
    }
    return params, fc_size


def reference_forward(params, x):
    """Pure-JAX f32 (no Pallas) mirror of ConvModel.forward, for validation."""
    hi = lax.Precision.HIGHEST
    y = x / 255.0
    y = lax.conv_general_dilated(y, params["conv1_w"], (CONV1_S, CONV1_S),
                                 "VALID",
                                 dimension_numbers=("NCHW", "OIHW", "NCHW"),
                                 precision=hi)
    y = jnp.maximum(y + params["conv1_b"][None, :, None, None], 0.0)
    y = lax.conv_general_dilated(y, params["conv2_w"], (CONV2_S, CONV2_S),
                                 "VALID",
                                 dimension_numbers=("NCHW", "OIHW", "NCHW"),
                                 precision=hi)
    y = jnp.maximum(y + params["conv2_b"][None, :, None, None], 0.0)
    flat = y.reshape(y.shape[0], -1)
    h1 = jnp.maximum(jnp.dot(flat, params["fc1_w"].T, precision=hi)
                     + params["fc1_b"], 0.0)
    h2 = jnp.maximum(jnp.dot(h1, params["fc2_w"].T, precision=hi)
                     + params["fc2_b"], 0.0)
    return jnp.dot(h2, params["fc3_w"].T, precision=hi) + params["fc3_b"]


if __name__ == "__main__":
    # Small shapes consistent with the module: obs_shape=(4, 28, 28), batch=2,
    # num_actions=4.  conv1 -> 6x6, conv2 -> 2x2, fc_size = 32*2*2 = 128.
    key = jax.random.PRNGKey(0)
    k_param, k_x = jax.random.split(key)

    obs_shape = (4, 28, 28)
    num_actions = 4
    batch = 2

    params, _ = init_params(k_param, obs_shape, num_actions)
    prepped = prepare_params(params, obs_shape, num_actions)   # one-time prep

    # pixel-like input in [0, 255)
    x = jax.random.uniform(k_x, (batch, *obs_shape), jnp.float32,
                           minval=0.0, maxval=255.0)

    q_values = conv_model_forward(prepped, x, num_actions=num_actions)
    jax.block_until_ready(q_values)

    assert q_values.shape == (batch, num_actions)
    assert q_values.dtype == jnp.float32

    # Validate against the pure-JAX f32 reference of the original module
    # (bf16 operands with f32 accumulation stay inside this tolerance).
    q_ref = reference_forward(params, x)
    err = float(jnp.max(jnp.abs(q_values - q_ref)))
    assert err < 1e-2, f"mismatch vs reference: max abs err {err}"

    print("KERNEL_OK")
</pallas_src>

<mosaic_0001>
module attributes {stable_mosaic.version = 11 : i64} {
  func.func @_conv1_matmul_kernel(%arg0: i32, %arg1: memref<72x256xbf16, #tpu.memory_space<vmem>>, %arg2: memref<256x16xbf16, #tpu.memory_space<vmem>>, %arg3: memref<1x16xf32, #tpu.memory_space<vmem>>, %arg4: memref<72x16xbf16, #tpu.memory_space<vmem>>) attributes {dimension_semantics = [#tpu.dimension_semantics<parallel>], iteration_bounds = array<i64: 1>, scalar_prefetch = 0 : i64, scratch_operands = 0 : i64, tpu.core_type = #tpu.core_type<tc>, window_params = [{transform_indices = @transform_0, window_bounds = array<i64: 72, 256>}, {pipeline_mode = #tpu.pipeline_mode<synchronous>, transform_indices = @transform_1, window_bounds = array<i64: 256, 16>}, {pipeline_mode = #tpu.pipeline_mode<synchronous>, transform_indices = @transform_2, window_bounds = array<i64: 1, 16>}, {transform_indices = @transform_3, window_bounds = array<i64: 72, 16>}]} {
    %c0 = arith.constant 0 : index
    %c0_0 = arith.constant 0 : index
    %0 = vector.load %arg1[%c0, %c0_0] : memref<72x256xbf16, #tpu.memory_space<vmem>>, vector<72x256xbf16>
    %c0_1 = arith.constant 0 : index
    %c0_2 = arith.constant 0 : index
    %1 = vector.load %arg2[%c0_1, %c0_2] : memref<256x16xbf16, #tpu.memory_space<vmem>>, vector<256x16xbf16>
    %cst = arith.constant dense<0.000000e+00> : vector<72x16xf32>
    %2 = tpu.matmul %0, %1, %cst {dimension_numbers = #tpu.dot_dimension_numbers<[1], [0], [0], [1], [0, 0, 1, 1], [], []>} : vector<72x256xbf16>, vector<256x16xbf16>, vector<72x16xf32> -> vector<72x16xf32>
    %c0_3 = arith.constant 0 : index
    %c0_4 = arith.constant 0 : index
    %3 = vector.load %arg3[%c0_3, %c0_4] : memref<1x16xf32, #tpu.memory_space<vmem>>, vector<1x16xf32>
    %4 = vector.broadcast %3 : vector<1x16xf32> to vector<72x16xf32>
    %5 = arith.addf %2, %4 : vector<72x16xf32>
    %cst_5 = arith.constant 0.000000e+00 : f32
    %6 = vector.broadcast %cst_5 : f32 to vector<72x16xf32>
    %7 = arith.maximumf %5, %6 : vector<72x16xf32>
    %8 = arith.truncf %7 : vector<72x16xf32> to vector<72x16xbf16>
    %c0_6 = arith.constant 0 : index
    %c0_7 = arith.constant 0 : index
    %9 = vector.load %arg4[%c0_6, %c0_7] : memref<72x16xbf16, #tpu.memory_space<vmem>>, vector<72x16xbf16>
    tpu.vector_store %arg4[%c0_6, %c0_7], %8 {strides = array<i32>} : memref<72x16xbf16, #tpu.memory_space<vmem>>, vector<72x16xbf16>,
    return
  }
  func.func @transform_0(%arg0: i32) -> (i32, i32) {
    %c0_i32 = arith.constant 0 : i32
    %c0_i32_0 = arith.constant 0 : i32
    return %arg0, %c0_i32 : i32, i32
  }
  func.func @transform_1(%arg0: i32) -> (i32, i32) {
    %c0_i32 = arith.constant 0 : i32
    %c0_i32_0 = arith.constant 0 : i32
    %c0_i32_1 = arith.constant 0 : i32
    return %c0_i32, %c0_i32_0 : i32, i32
  }
  func.func @transform_2(%arg0: i32) -> (i32, i32) {
    %c0_i32 = arith.constant 0 : i32
    %c0_i32_0 = arith.constant 0 : i32
    %c0_i32_1 = arith.constant 0 : i32
    return %c0_i32, %c0_i32_0 : i32, i32
  }
  func.func @transform_3(%arg0: i32) -> (i32, i32) {
    %c0_i32 = arith.constant 0 : i32
    %c0_i32_0 = arith.constant 0 : i32
    return %arg0, %c0_i32 : i32, i32
  }
}

module attributes {stable_mosaic.version = 11 : i64} {
  func.func @_conv2_fc_fused_kernel(%arg0: i32, %arg1: memref<8x1024xbf16, #tpu.memory_space<vmem>>, %arg2: memref<1024x128xbf16, #tpu.memory_space<vmem>>, %arg3: memref<1x128xf32, #tpu.memory_space<vmem>>, %arg4: memref<128x256xbf16, #tpu.memory_space<vmem>>, %arg5: memref<1x256xf32, #tpu.memory_space<vmem>>, %arg6: memref<256x512xbf16, #tpu.memory_space<vmem>>, %arg7: memref<1x512xf32, #tpu.memory_space<vmem>>, %arg8: memref<512x128xbf16, #tpu.memory_space<vmem>>, %arg9: memref<1x128xf32, #tpu.memory_space<vmem>>, %arg10: memref<8x128xf32, #tpu.memory_space<vmem>>) attributes {dimension_semantics = [#tpu.dimension_semantics<parallel>], iteration_bounds = array<i64: 1>, scalar_prefetch = 0 : i64, scratch_operands = 0 : i64, tpu.core_type = #tpu.core_type<tc>, window_params = [{transform_indices = @transform_0, window_bounds = array<i64: 8, 1024>}, {pipeline_mode = #tpu.pipeline_mode<synchronous>, transform_indices = @transform_1, window_bounds = array<i64: 1024, 128>}, {pipeline_mode = #tpu.pipeline_mode<synchronous>, transform_indices = @transform_2, window_bounds = array<i64: 1, 128>}, {pipeline_mode = #tpu.pipeline_mode<synchronous>, transform_indices = @transform_3, window_bounds = array<i64: 128, 256>}, {pipeline_mode = #tpu.pipeline_mode<synchronous>, transform_indices = @transform_4, window_bounds = array<i64: 1, 256>}, {pipeline_mode = #tpu.pipeline_mode<synchronous>, transform_indices = @transform_5, window_bounds = array<i64: 256, 512>}, {pipeline_mode = #tpu.pipeline_mode<synchronous>, transform_indices = @transform_6, window_bounds = array<i64: 1, 512>}, {pipeline_mode = #tpu.pipeline_mode<synchronous>, transform_indices = @transform_7, window_bounds = array<i64: 512, 128>}, {pipeline_mode = #tpu.pipeline_mode<synchronous>, transform_indices = @transform_8, window_bounds = array<i64: 1, 128>}, {transform_indices = @transform_9, window_bounds = array<i64: 8, 128>}]} {
    %c0 = arith.constant 0 : index
    %c0_0 = arith.constant 0 : index
    %0 = vector.load %arg1[%c0, %c0_0] : memref<8x1024xbf16, #tpu.memory_space<vmem>>, vector<8x1024xbf16>
    %c0_1 = arith.constant 0 : index
    %c0_2 = arith.constant 0 : index
    %1 = vector.load %arg2[%c0_1, %c0_2] : memref<1024x128xbf16, #tpu.memory_space<vmem>>, vector<1024x128xbf16>
    %cst = arith.constant dense<0.000000e+00> : vector<8x128xf32>
    %2 = tpu.matmul %0, %1, %cst {dimension_numbers = #tpu.dot_dimension_numbers<[1], [0], [0], [1], [0, 0, 1, 1], [], []>} : vector<8x1024xbf16>, vector<1024x128xbf16>, vector<8x128xf32> -> vector<8x128xf32>
    %c0_3 = arith.constant 0 : index
    %c0_4 = arith.constant 0 : index
    %3 = vector.load %arg3[%c0_3, %c0_4] : memref<1x128xf32, #tpu.memory_space<vmem>>, vector<1x128xf32>
    %4 = vector.broadcast %3 : vector<1x128xf32> to vector<8x128xf32>
    %5 = arith.addf %2, %4 : vector<8x128xf32>
    %cst_5 = arith.constant 0.000000e+00 : f32
    %6 = vector.broadcast %cst_5 : f32 to vector<8x128xf32>
    %7 = arith.maximumf %5, %6 : vector<8x128xf32>
    %8 = arith.truncf %7 : vector<8x128xf32> to vector<8x128xbf16>
    %c0_6 = arith.constant 0 : index
    %c0_7 = arith.constant 0 : index
    %9 = vector.load %arg4[%c0_6, %c0_7] : memref<128x256xbf16, #tpu.memory_space<vmem>>, vector<128x256xbf16>
    %cst_8 = arith.constant dense<0.000000e+00> : vector<8x256xf32>
    %10 = tpu.matmul %8, %9, %cst_8 {dimension_numbers = #tpu.dot_dimension_numbers<[1], [0], [0], [1], [0, 0, 1, 1], [], []>} : vector<8x128xbf16>, vector<128x256xbf16>, vector<8x256xf32> -> vector<8x256xf32>
    %c0_9 = arith.constant 0 : index
    %c0_10 = arith.constant 0 : index
    %11 = vector.load %arg5[%c0_9, %c0_10] : memref<1x256xf32, #tpu.memory_space<vmem>>, vector<1x256xf32>
    %12 = vector.broadcast %11 : vector<1x256xf32> to vector<8x256xf32>
    %13 = arith.addf %10, %12 : vector<8x256xf32>
    %cst_11 = arith.constant 0.000000e+00 : f32
    %14 = vector.broadcast %cst_11 : f32 to vector<8x256xf32>
    %15 = arith.maximumf %13, %14 : vector<8x256xf32>
    %16 = arith.truncf %15 : vector<8x256xf32> to vector<8x256xbf16>
    %c0_12 = arith.constant 0 : index
    %c0_13 = arith.constant 0 : index
    %17 = vector.load %arg6[%c0_12, %c0_13] : memref<256x512xbf16, #tpu.memory_space<vmem>>, vector<256x512xbf16>
    %cst_14 = arith.constant dense<0.000000e+00> : vector<8x512xf32>
    %18 = tpu.matmul %16, %17, %cst_14 {dimension_numbers = #tpu.dot_dimension_numbers<[1], [0], [0], [1], [0, 0, 1, 1], [], []>} : vector<8x256xbf16>, vector<256x512xbf16>, vector<8x512xf32> -> vector<8x512xf32>
    %c0_15 = arith.constant 0 : index
    %c0_16 = arith.constant 0 : index
    %19 = vector.load %arg7[%c0_15, %c0_16] : memref<1x512xf32, #tpu.memory_space<vmem>>, vector<1x512xf32>
    %20 = vector.broadcast %19 : vector<1x512xf32> to vector<8x512xf32>
    %21 = arith.addf %18, %20 : vector<8x512xf32>
    %cst_17 = arith.constant 0.000000e+00 : f32
    %22 = vector.broadcast %cst_17 : f32 to vector<8x512xf32>
    %23 = arith.maximumf %21, %22 : vector<8x512xf32>
    %24 = arith.truncf %23 : vector<8x512xf32> to vector<8x512xbf16>
    %c0_18 = arith.constant 0 : index
    %c0_19 = arith.constant 0 : index
    %25 = vector.load %arg8[%c0_18, %c0_19] : memref<512x128xbf16, #tpu.memory_space<vmem>>, vector<512x128xbf16>
    %cst_20 = arith.constant dense<0.000000e+00> : vector<8x128xf32>
    %26 = tpu.matmul %24, %25, %cst_20 {dimension_numbers = #tpu.dot_dimension_numbers<[1], [0], [0], [1], [0, 0, 1, 1], [], []>} : vector<8x512xbf16>, vector<512x128xbf16>, vector<8x128xf32> -> vector<8x128xf32>
    %c0_21 = arith.constant 0 : index
    %c0_22 = arith.constant 0 : index
    %27 = vector.load %arg9[%c0_21, %c0_22] : memref<1x128xf32, #tpu.memory_space<vmem>>, vector<1x128xf32>
    %28 = vector.broadcast %27 : vector<1x128xf32> to vector<8x128xf32>
    %29 = arith.addf %26, %28 : vector<8x128xf32>
    %c0_23 = arith.constant 0 : index
    %c0_24 = arith.constant 0 : index
    %30 = vector.load %arg10[%c0_23, %c0_24] : memref<8x128xf32, #tpu.memory_space<vmem>>, vector<8x128xf32>
    tpu.vector_store %arg10[%c0_23, %c0_24], %29 {strides = array<i32>} : memref<8x128xf32, #tpu.memory_space<vmem>>, vector<8x128xf32>,
    return
  }
  func.func @transform_0(%arg0: i32) -> (i32, i32) {
    %c0_i32 = arith.constant 0 : i32
    %c0_i32_0 = arith.constant 0 : i32
    return %arg0, %c0_i32 : i32, i32
  }
  func.func @transform_1(%arg0: i32) -> (i32, i32) {
    %c0_i32 = arith.constant 0 : i32
    %c0_i32_0 = arith.constant 0 : i32
    %c0_i32_1 = arith.constant 0 : i32
    return %c0_i32, %c0_i32_0 : i32, i32
  }
  func.func @transform_2(%arg0: i32) -> (i32, i32) {
    %c0_i32 = arith.constant 0 : i32
    %c0_i32_0 = arith.constant 0 : i32
    %c0_i32_1 = arith.constant 0 : i32
    return %c0_i32, %c0_i32_0 : i32, i32
  }
  func.func @transform_3(%arg0: i32) -> (i32, i32) {
    %c0_i32 = arith.constant 0 : i32
    %c0_i32_0 = arith.constant 0 : i32
    %c0_i32_1 = arith.constant 0 : i32
    return %c0_i32, %c0_i32_0 : i32, i32
  }
  func.func @transform_4(%arg0: i32) -> (i32, i32) {
    %c0_i32 = arith.constant 0 : i32
    %c0_i32_0 = arith.constant 0 : i32
    %c0_i32_1 = arith.constant 0 : i32
    return %c0_i32, %c0_i32_0 : i32, i32
  }
  func.func @transform_5(%arg0: i32) -> (i32, i32) {
    %c0_i32 = arith.constant 0 : i32
    %c0_i32_0 = arith.constant 0 : i32
    %c0_i32_1 = arith.constant 0 : i32
    return %c0_i32, %c0_i32_0 : i32, i32
  }
  func.func @transform_6(%arg0: i32) -> (i32, i32) {
    %c0_i32 = arith.constant 0 : i32
    %c0_i32_0 = arith.constant 0 : i32
    %c0_i32_1 = arith.constant 0 : i32
    return %c0_i32, %c0_i32_0 : i32, i32
  }
  func.func @transform_7(%arg0: i32) -> (i32, i32) {
    %c0_i32 = arith.constant 0 : i32
    %c0_i32_0 = arith.constant 0 : i32
    %c0_i32_1 = arith.constant 0 : i32
    return %c0_i32, %c0_i32_0 : i32, i32
  }
  func.func @transform_8(%arg0: i32) -> (i32, i32) {
    %c0_i32 = arith.constant 0 : i32
    %c0_i32_0 = arith.constant 0 : i32
    %c0_i32_1 = arith.constant 0 : i32
    return %c0_i32, %c0_i32_0 : i32, i32
  }
  func.func @transform_9(%arg0: i32) -> (i32, i32) {
    %c0_i32 = arith.constant 0 : i32
    %c0_i32_0 = arith.constant 0 : i32
    return %arg0, %c0_i32 : i32, i32
  }
}

</mosaic_0001>

<llo_original>
// kernel: conv_model_forward.2
$region0: #{conv_model_forward.2}
  #allocation0 [shape = 'u32[]', space=smem, size = 0x4, offset = 0x4, fixed_abs, tag = 'smem constant byte address 0x4 - core index']
  #allocation1 [shape = 'u32[144,128]{1,0:T(1,128)}', space=vmem, size = 0x12000, scoped, tag = 'internal scratch']
  %s0 = inlined_call_operand.vmem [shape: bf16[72,256], index: 0, kind: input, shape index: {}]
  %s1 = inlined_call_operand.vmem [shape: bf16[256,16], index: 1, kind: input, shape index: {}]
  %s2 = inlined_call_operand.vmem [shape: f32[1,16], index: 2, kind: input, shape index: {}]
  %s3 = inlined_call_operand.vmem [shape: bf16[72,16], index: 3, kind: output, shape index: {}]
  %s4 = sld [smem:[#allocation0]]
  $region22: #{conv_model_forward.2} parent=0
    _
  %s6 = ssub.s32 1, %s4
  %s7 = scalar_select 0, %s6, %s4
  // Predicated region
  $region2: #{conv_model_forward.2} parent=0 // pred_check
    _
  $region3: #{conv_model_forward.2} parent=0 // pred_check_branch
    %9 = sbr.rel (0) target = $region5
  $region4: #{conv_model_forward.2} parent=0 // pred_region
    _
  $region5: #{conv_model_forward.2} parent=0 // pred_fallthru
    _
  // Predicated region
  $region6: #{conv_model_forward.2} parent=0 // pred_check
    _
  $region7: #{conv_model_forward.2} parent=0 // pred_check_branch
    %11 = sbr.rel (0) target = $region9
  $region8: #{conv_model_forward.2} parent=0 // pred_region
    _
  $region9: #{conv_model_forward.2} parent=0 // pred_fallthru
    _
  // Predicated region
  $region10: #{conv_model_forward.2} parent=0 // pred_check
    _
  $region11: #{conv_model_forward.2} parent=0 // pred_check_branch
    %13 = sbr.rel (0) target = $region13
  $region12: #{conv_model_forward.2} parent=0 // pred_region
    _
  $region13: #{conv_model_forward.2} parent=0 // pred_fallthru
    _
  %v15 = vld [vmem:[%s0] sm:$0xff]
  %v16 = vld [vmem:[%s0 + $0x8] sm:$0xff]
  %v17 = vld [vmem:[%s0 + $0x10] sm:$0xff]
  %v18 = vld [vmem:[%s0 + $0x18] sm:$0xff]
  %v19 = vld [vmem:[%s0 + $0x20] sm:$0xff]
  %v20 = vld [vmem:[%s0 + $0x28] sm:$0xff]
  %v21 = vld [vmem:[%s0 + $0x30] sm:$0xff]
  %v22 = vld [vmem:[%s0 + $0x38] sm:$0xff]
  %v23 = vld [vmem:[%s0 + $0x40] sm:$0xff]
  %v24 = vld [vmem:[%s1] sm:$0xf]
  %v25 = vld [vmem:[%s1 + $0x4] sm:$0xf]
  %v26 = vld [vmem:[%s1 + $0x8] sm:$0xf]
  %v27 = vld [vmem:[%s1 + $0xc] sm:$0xf]
  %v28 = vld [vmem:[%s1 + $0x10] sm:$0xf]
  %v29 = vld [vmem:[%s1 + $0x14] sm:$0xf]
  %v30 = vld [vmem:[%s1 + $0x18] sm:$0xf]
  %v31 = vld [vmem:[%s1 + $0x1c] sm:$0xf]
  %v32 = vld [vmem:[%s1 + $0x20] sm:$0xf]
  %v33 = vld [vmem:[%s1 + $0x24] sm:$0xf]
  %v34 = vld [vmem:[%s1 + $0x28] sm:$0xf]
  %v35 = vld [vmem:[%s1 + $0x2c] sm:$0xf]
  %v36 = vld [vmem:[%s1 + $0x30] sm:$0xf]
  %v37 = vld [vmem:[%s1 + $0x34] sm:$0xf]
  %v38 = vld [vmem:[%s1 + $0x38] sm:$0xf]
  %v39 = vld [vmem:[%s1 + $0x3c] sm:$0xf]
  %v40 = vld [vmem:[%s1 + $0x40] sm:$0xf]
  %v41 = vld [vmem:[%s1 + $0x44] sm:$0xf]
  %v42 = vld [vmem:[%s1 + $0x48] sm:$0xf]
  %v43 = vld [vmem:[%s1 + $0x4c] sm:$0xf]
  %v44 = vld [vmem:[%s1 + $0x50] sm:$0xf]
  %v45 = vld [vmem:[%s1 + $0x54] sm:$0xf]
  %v46 = vld [vmem:[%s1 + $0x58] sm:$0xf]
  %v47 = vld [vmem:[%s1 + $0x5c] sm:$0xf]
  %v48 = vld [vmem:[%s1 + $0x60] sm:$0xf]
  %v49 = vld [vmem:[%s1 + $0x64] sm:$0xf]
  %v50 = vld [vmem:[%s1 + $0x68] sm:$0xf]
  %v51 = vld [vmem:[%s1 + $0x6c] sm:$0xf]
  %v52 = vld [vmem:[%s1 + $0x70] sm:$0xf]
  %v53 = vld [vmem:[%s1 + $0x74] sm:$0xf]
  %v54 = vld [vmem:[%s1 + $0x78] sm:$0xf]
  %v55 = vld [vmem:[%s1 + $0x7c] sm:$0xf]
  %v56 = vld [vmem:[%s2] sm:$0x1]
  %v58 = vlaneseq
  %v59 = vshrl.u32 %v58, 7
  %v60 = vsub.s32 0, %v59
  %v61 = vrot.slane %v56, %v60
  %v72 = vunpack.c.l.b16 %v15
  %v73 = vunpack.c.h.b16 %v15
  %v74 = vunpack.c.l.b16 %v16
  %v75 = vunpack.c.h.b16 %v16
  %v76 = vunpack.c.l.b16 %v17
  %v77 = vunpack.c.h.b16 %v17
  %v78 = vunpack.c.l.b16 %v18
  %v79 = vunpack.c.h.b16 %v18
  %v80 = vunpack.c.l.b16 %v19
  %v81 = vunpack.c.h.b16 %v19
  %v82 = vunpack.c.l.b16 %v20
  %v83 = vunpack.c.h.b16 %v20
  %v84 = vunpack.c.l.b16 %v21
  %v85 = vunpack.c.h.b16 %v21
  %v86 = vunpack.c.l.b16 %v22
  %v87 = vunpack.c.h.b16 %v22
  %v88 = vunpack.c.l.b16 %v23
  %v89 = vunpack.c.h.b16 %v23
  %v90 = vpack.c.b16 %v74, %v72
  %v91 = vpack.c.b16 %v75, %v73
  %v92 = vpack.c.b16 %v78, %v76
  %v93 = vpack.c.b16 %v79, %v77
  %v94 = vpack.c.b16 %v82, %v80
  %v95 = vpack.c.b16 %v83, %v81
  %v96 = vpack.c.b16 %v86, %v84
  %v97 = vpack.c.b16 %v87, %v85
  %v98 = vpack.c.b16 %v88, %v88
  %v99 = vpack.c.b16 %v89, %v89
  %v142 = vunpack.c.l.b16 %v24
  %v143 = vunpack.c.l.b16 %v25
  %v144 = vunpack.c.l.b16 %v26
  %v145 = vunpack.c.l.b16 %v27
  %v146 = vunpack.c.l.b16 %v28
  %v147 = vunpack.c.l.b16 %v29
  %v148 = vunpack.c.l.b16 %v30
  %v149 = vunpack.c.l.b16 %v31
  %v150 = vunpack.c.l.b16 %v32
  %v151 = vunpack.c.l.b16 %v33
  %v152 = vunpack.c.l.b16 %v34
  %v153 = vunpack.c.l.b16 %v35
  %v154 = vunpack.c.l.b16 %v36
  %v155 = vunpack.c.l.b16 %v37
  %v156 = vunpack.c.l.b16 %v38
  %v157 = vunpack.c.l.b16 %v39
  %v158 = vunpack.c.l.b16 %v40
  %v159 = vunpack.c.l.b16 %v41
  %v160 = vunpack.c.l.b16 %v42
  %v161 = vunpack.c.l.b16 %v43
  %v162 = vunpack.c.l.b16 %v44
  %v163 = vunpack.c.l.b16 %v45
  %v164 = vunpack.c.l.b16 %v46
  %v165 = vunpack.c.l.b16 %v47
  %v166 = vunpack.c.l.b16 %v48
  %v167 = vunpack.c.l.b16 %v49
  %v168 = vunpack.c.l.b16 %v50
  %v169 = vunpack.c.l.b16 %v51
  %v170 = vunpack.c.l.b16 %v52
  %v171 = vunpack.c.l.b16 %v53
  %v172 = vunpack.c.l.b16 %v54
  %v173 = vunpack.c.l.b16 %v55
  %v174 = vpack.c.b16 %v143, %v142
  %v175 = vpack.c.b16 %v145, %v144
  %v176 = vpack.c.b16 %v147, %v146
  %v177 = vpack.c.b16 %v149, %v148
  %v178 = vpack.c.b16 %v151, %v150
  %v179 = vpack.c.b16 %v153, %v152
  %v180 = vpack.c.b16 %v155, %v154
  %v181 = vpack.c.b16 %v157, %v156
  %v182 = vpack.c.b16 %v159, %v158
  %v183 = vpack.c.b16 %v161, %v160
  %v184 = vpack.c.b16 %v163, %v162
  %v185 = vpack.c.b16 %v165, %v164
  %v186 = vpack.c.b16 %v167, %v166
  %v187 = vpack.c.b16 %v169, %v168
  %v188 = vpack.c.b16 %v171, %v170
  %v189 = vpack.c.b16 %v173, %v172
  %206 = vmatprep.subr.bf16.mxu0 0
  %207 = vmatpush1.bf16.msra.mxu0 %v174
  %208 = vmatprep.subr.bf16.mxu0 0
  %209 = vmatpush1.bf16.msra.mxu0 %v175
  %210 = vmatprep.subr.bf16.mxu0 0
  %211 = vmatpush1.bf16.msra.mxu0 %v176
  %212 = vmatprep.subr.bf16.mxu0 0
  %213 = vmatpush1.bf16.msra.mxu0 %v177
  %214 = vmatprep.subr.bf16.mxu0 0
  %215 = vmatpush1.bf16.msra.mxu0 %v178
  %216 = vmatprep.subr.bf16.mxu0 0
  %217 = vmatpush1.bf16.msra.mxu0 %v179
  %218 = vmatprep.subr.bf16.mxu0 0
  %219 = vmatpush1.bf16.msra.mxu0 %v180
  %220 = vmatprep.subr.bf16.mxu0 0
  %221 = vmatpush1.bf16.msra.mxu0 %v181
  %222 = vmatprep.subr.bf16.mxu0 0
  %223 = vmatpush1.bf16.msra.mxu0 %v182
  %224 = vmatprep.subr.bf16.mxu0 0
  %225 = vmatpush1.bf16.msra.mxu0 %v183
  %226 = vmatprep.subr.bf16.mxu0 0
  %227 = vmatpush1.bf16.msra.mxu0 %v184
  %228 = vmatprep.subr.bf16.mxu0 0
  %229 = vmatpush1.bf16.msra.mxu0 %v185
  %230 = vmatprep.subr.bf16.mxu0 0
  %231 = vmatpush1.bf16.msra.mxu0 %v186
  %232 = vmatprep.subr.bf16.mxu0 0
  %233 = vmatpush1.bf16.msra.mxu0 %v187
  %234 = vmatprep.subr.bf16.mxu0 0
  %235 = vmatpush1.bf16.msra.mxu0 %v188
  %236 = vmatprep.subr.bf16.mxu0 0
  %237 = vmatpush1.bf16.msra.mxu0 %v189
  %238 = vmatprep.mubr.bf16.mxu0 %v91
  %239 = vmatmul.mubr.bf16.gmra.mrb[0].mxu0 %v90
  %v240 = vpop.f32.mrb[0].mxu0
  %v241 = vadd.f32 %v61, %v240
  %v242 = vpop.f32.mrb[0].mxu0
  %v243 = vpop.f32.mrb[0].mxu0
  %v244 = vadd.f32 %v61, %v243
  %v245 = vpop.f32.mrb[0].mxu0
  %246 = vmatprep.mubr.bf16.mxu0 %v93
  %247 = vmatmul.mubr.bf16.gmra.mrb[0].mxu0 %v92
  %v248 = vpop.f32.mrb[0].mxu0
  %v249 = vadd.f32 %v61, %v248
  %v250 = vpop.f32.mrb[0].mxu0
  %v251 = vpop.f32.mrb[0].mxu0
  %v252 = vadd.f32 %v61, %v251
  %v253 = vpop.f32.mrb[0].mxu0
  %254 = vmatprep.mubr.bf16.mxu0 %v95
  %255 = vmatmul.mubr.bf16.gmra.mrb[0].mxu0 %v94
  %v256 = vpop.f32.mrb[0].mxu0
  %v257 = vadd.f32 %v61, %v256
  %v258 = vpop.f32.mrb[0].mxu0
  %v259 = vpop.f32.mrb[0].mxu0
  %v260 = vadd.f32 %v61, %v259
  %v261 = vpop.f32.mrb[0].mxu0
  %262 = vmatprep.mubr.bf16.mxu0 %v97
  %263 = vmatmul.mubr.bf16.gmra.mrb[0].mxu0 %v96
  %v264 = vpop.f32.mrb[0].mxu0
  %v265 = vadd.f32 %v61, %v264
  %v266 = vpop.f32.mrb[0].mxu0
  %v267 = vpop.f32.mrb[0].mxu0
  %v268 = vadd.f32 %v61, %v267
  %v269 = vpop.f32.mrb[0].mxu0
  %270 = vmatprep.mubr.bf16.mxu0 %v99
  %271 = vmatmul.mubr.bf16.gmra.mrb[0].mxu0 %v98
  %v272 = vpop.f32.mrb[0].mxu0
  %v273 = vadd.f32 %v61, %v272
  %v274 = vpop.f32.mrb[0].mxu0
  %v275 = vpop.f32.mrb[0].mxu0
  %v276 = vpop.f32.mrb[0].mxu0
  %277 = vdwg.mxu0
  %v278 = vmax.f32 %v241, 0.0
  %v279 = vmax.f32 %v244, 0.0
  %v280 = vmax.f32 %v249, 0.0
  %v281 = vmax.f32 %v252, 0.0
  %v282 = vmax.f32 %v257, 0.0
  %v283 = vmax.f32 %v260, 0.0
  %v284 = vmax.f32 %v265, 0.0
  %v285 = vmax.f32 %v268, 0.0
  %v286 = vmax.f32 %v273, 0.0
  %v287 = vpack.c.bf16 %v279, %v278
  %v288 = vpack.c.bf16 %v281, %v280
  %v289 = vpack.c.bf16 %v283, %v282
  %v290 = vpack.c.bf16 %v285, %v284
  %v291 = vpack.c.bf16 %v286, %v286
  %v297 = vunpack.c.l.b16 %v287
  %v298 = vunpack.c.h.b16 %v287
  %v299 = vunpack.c.l.b16 %v288
  %v300 = vunpack.c.h.b16 %v288
  %v301 = vunpack.c.l.b16 %v289
  %v302 = vunpack.c.h.b16 %v289
  %v303 = vunpack.c.l.b16 %v290
  %v304 = vunpack.c.h.b16 %v290
  %v305 = vunpack.c.l.b16 %v291
  %v306 = vpack.c.b16 %v297, %v297
  %v307 = vpack.c.b16 %v298, %v298
  %v308 = vpack.c.b16 %v299, %v299
  %v309 = vpack.c.b16 %v300, %v300
  %v310 = vpack.c.b16 %v301, %v301
  %v311 = vpack.c.b16 %v302, %v302
  %v312 = vpack.c.b16 %v303, %v303
  %v313 = vpack.c.b16 %v304, %v304
  %v314 = vpack.c.b16 %v305, %v305
  %vm324 = vcmask 125952
  %325 = vst.msk [vmem:[%s3] sm:$0xf] %vm324, %v306
  %326 = vst.msk [vmem:[%s3 + $0x4] sm:$0xf] %vm324, %v307
  %327 = vst.msk [vmem:[%s3 + $0x8] sm:$0xf] %vm324, %v308
  %328 = vst.msk [vmem:[%s3 + $0xc] sm:$0xf] %vm324, %v309
  %329 = vst.msk [vmem:[%s3 + $0x10] sm:$0xf] %vm324, %v310
  %330 = vst.msk [vmem:[%s3 + $0x14] sm:$0xf] %vm324, %v311
  %331 = vst.msk [vmem:[%s3 + $0x18] sm:$0xf] %vm324, %v312
  %332 = vst.msk [vmem:[%s3 + $0x1c] sm:$0xf] %vm324, %v313
  %333 = vst.msk [vmem:[%s3 + $0x20] sm:$0xf] %vm324, %v314
  // Predicated region
  $region14: #{conv_model_forward.2} parent=0 // pred_check
    _
  $region15: #{conv_model_forward.2} parent=0 // pred_check_branch
    %335 = sbr.rel (0) target = $region17
  $region16: #{conv_model_forward.2} parent=0 // pred_region
    _
  $region17: #{conv_model_forward.2} parent=0 // pred_fallthru
    _
  // Predicated region
  $region18: #{conv_model_forward.2} parent=0 // pred_check
    _
  $region19: #{conv_model_forward.2} parent=0 // pred_check_branch
    %337 = sbr.rel (0) target = $region21
  $region20: #{conv_model_forward.2} parent=0 // pred_region
    _
  $region21: #{conv_model_forward.2} parent=0 // pred_fallthru
    _

// kernel: conv_model_forward.3
$region0: #{conv_model_forward.3}
  #allocation0 [shape = 'u32[]', space=smem, size = 0x4, offset = 0x4, fixed_abs, tag = 'smem constant byte address 0x4 - core index']
  #allocation1 [shape = 'u32[144,128]{1,0:T(1,128)}', space=vmem, size = 0x12000, scoped, tag = 'internal scratch']
  %s0 = inlined_call_operand.vmem [shape: bf16[8,1024], index: 0, kind: input, shape index: {}]
  %s1 = inlined_call_operand.vmem [shape: bf16[1024,128], index: 1, kind: input, shape index: {}]
  %s2 = inlined_call_operand.vmem [shape: f32[1,128], index: 2, kind: input, shape index: {}]
  %s3 = inlined_call_operand.vmem [shape: bf16[128,256], index: 3, kind: input, shape index: {}]
  %s4 = inlined_call_operand.vmem [shape: f32[1,256], index: 4, kind: input, shape index: {}]
  %s5 = inlined_call_operand.vmem [shape: bf16[256,512], index: 5, kind: input, shape index: {}]
  %s6 = inlined_call_operand.vmem [shape: f32[1,512], index: 6, kind: input, shape index: {}]
  %s7 = inlined_call_operand.vmem [shape: bf16[512,128], index: 7, kind: input, shape index: {}]
  %s8 = inlined_call_operand.vmem [shape: f32[1,128], index: 8, kind: input, shape index: {}]
  %s9 = inlined_call_operand.vmem [shape: f32[8,128], index: 9, kind: output, shape index: {}]
  %s10 = sld [smem:[#allocation0]]
  $region46: #{conv_model_forward.3} parent=0
    _
  %s12 = ssub.s32 1, %s10
  %s13 = scalar_select 0, %s12, %s10
  // Predicated region
  $region2: #{conv_model_forward.3} parent=0 // pred_check
    _
  $region3: #{conv_model_forward.3} parent=0 // pred_check_branch
    %15 = sbr.rel (0) target = $region5
  $region4: #{conv_model_forward.3} parent=0 // pred_region
    _
  $region5: #{conv_model_forward.3} parent=0 // pred_fallthru
    _
  // Predicated region
  $region6: #{conv_model_forward.3} parent=0 // pred_check
    _
  $region7: #{conv_model_forward.3} parent=0 // pred_check_branch
    %17 = sbr.rel (0) target = $region9
  $region8: #{conv_model_forward.3} parent=0 // pred_region
    _
  $region9: #{conv_model_forward.3} parent=0 // pred_fallthru
    _
  // Predicated region
  $region10: #{conv_model_forward.3} parent=0 // pred_check
    _
  $region11: #{conv_model_forward.3} parent=0 // pred_check_branch
    %19 = sbr.rel (0) target = $region13
  $region12: #{conv_model_forward.3} parent=0 // pred_region
    _
  $region13: #{conv_model_forward.3} parent=0 // pred_fallthru
    _
  // Predicated region
  $region14: #{conv_model_forward.3} parent=0 // pred_check
    _
  $region15: #{conv_model_forward.3} parent=0 // pred_check_branch
    %21 = sbr.rel (0) target = $region17
  $region16: #{conv_model_forward.3} parent=0 // pred_region
    _
  $region17: #{conv_model_forward.3} parent=0 // pred_fallthru
    _
  // Predicated region
  $region18: #{conv_model_forward.3} parent=0 // pred_check
    _
  $region19: #{conv_model_forward.3} parent=0 // pred_check_branch
    %23 = sbr.rel (0) target = $region21
  $region20: #{conv_model_forward.3} parent=0 // pred_region
    _
  $region21: #{conv_model_forward.3} parent=0 // pred_fallthru
    _
  // Predicated region
  $region22: #{conv_model_forward.3} parent=0 // pred_check
    _
  $region23: #{conv_model_forward.3} parent=0 // pred_check_branch
    %25 = sbr.rel (0) target = $region25
  $region24: #{conv_model_forward.3} parent=0 // pred_region
    _
  $region25: #{conv_model_forward.3} parent=0 // pred_fallthru
    _
  // Predicated region
  $region26: #{conv_model_forward.3} parent=0 // pred_check
    _
  $region27: #{conv_model_forward.3} parent=0 // pred_check_branch
    %27 = sbr.rel (0) target = $region29
  $region28: #{conv_model_forward.3} parent=0 // pred_region
    _
  $region29: #{conv_model_forward.3} parent=0 // pred_fallthru
    _
  // Predicated region
  $region30: #{conv_model_forward.3} parent=0 // pred_check
    _
  $region31: #{conv_model_forward.3} parent=0 // pred_check_branch
    %29 = sbr.rel (0) target = $region33
  $region32: #{conv_model_forward.3} parent=0 // pred_region
    _
  $region33: #{conv_model_forward.3} parent=0 // pred_fallthru
    _
  // Predicated region
  $region34: #{conv_model_forward.3} parent=0 // pred_check
    _
  $region35: #{conv_model_forward.3} parent=0 // pred_check_branch
    %31 = sbr.rel (0) target = $region37
  $region36: #{conv_model_forward.3} parent=0 // pred_region
    _
  $region37: #{conv_model_forward.3} parent=0 // pred_fallthru
    _
  %v33 = vld [vmem:[%s0] sm:$0xff]
  %v34 = vld [vmem:[%s0 + $0x8] sm:$0xff]
  %v35 = vld [vmem:[%s0 + $0x10] sm:$0xff]
  %v36 = vld [vmem:[%s0 + $0x18] sm:$0xff]
  %v37 = vld [vmem:[%s1] sm:$0xf]
  %v38 = vld [vmem:[%s1 + $0x4] sm:$0xf]
  %v39 = vld [vmem:[%s1 + $0x8] sm:$0xf]
  %v40 = vld [vmem:[%s1 + $0xc] sm:$0xf]
  %v41 = vld [vmem:[%s1 + $0x10] sm:$0xf]
  %v42 = vld [vmem:[%s1 + $0x14] sm:$0xf]
  %v43 = vld [vmem:[%s1 + $0x18] sm:$0xf]
  %v44 = vld [vmem:[%s1 + $0x1c] sm:$0xf]
  %v45 = vld [vmem:[%s1 + $0x20] sm:$0xf]
  %v46 = vld [vmem:[%s1 + $0x24] sm:$0xf]
  %v47 = vld [vmem:[%s1 + $0x28] sm:$0xf]
  %v48 = vld [vmem:[%s1 + $0x2c] sm:$0xf]
  %v49 = vld [vmem:[%s1 + $0x30] sm:$0xf]
  %v50 = vld [vmem:[%s1 + $0x34] sm:$0xf]
  %v51 = vld [vmem:[%s1 + $0x38] sm:$0xf]
  %v52 = vld [vmem:[%s1 + $0x3c] sm:$0xf]
  %v53 = vld [vmem:[%s1 + $0x40] sm:$0xf]
  %v54 = vld [vmem:[%s1 + $0x44] sm:$0xf]
  %v55 = vld [vmem:[%s1 + $0x48] sm:$0xf]
  %v56 = vld [vmem:[%s1 + $0x4c] sm:$0xf]
  %v57 = vld [vmem:[%s1 + $0x50] sm:$0xf]
  %v58 = vld [vmem:[%s1 + $0x54] sm:$0xf]
  %v59 = vld [vmem:[%s1 + $0x58] sm:$0xf]
  %v60 = vld [vmem:[%s1 + $0x5c] sm:$0xf]
  %v61 = vld [vmem:[%s1 + $0x60] sm:$0xf]
  %v62 = vld [vmem:[%s1 + $0x64] sm:$0xf]
  %v63 = vld [vmem:[%s1 + $0x68] sm:$0xf]
  %v64 = vld [vmem:[%s1 + $0x6c] sm:$0xf]
  %v65 = vld [vmem:[%s1 + $0x70] sm:$0xf]
  %v66 = vld [vmem:[%s1 + $0x74] sm:$0xf]
  %v67 = vld [vmem:[%s1 + $0x78] sm:$0xf]
  %v68 = vld [vmem:[%s1 + $0x7c] sm:$0xf]
  %v69 = vld [vmem:[%s1 + $0x80] sm:$0xf]
  %v70 = vld [vmem:[%s1 + $0x84] sm:$0xf]
  %v71 = vld [vmem:[%s1 + $0x88] sm:$0xf]
  %v72 = vld [vmem:[%s1 + $0x8c] sm:$0xf]
  %v73 = vld [vmem:[%s1 + $0x90] sm:$0xf]
  %v74 = vld [vmem:[%s1 + $0x94] sm:$0xf]
  %v75 = vld [vmem:[%s1 + $0x98] sm:$0xf]
  %v76 = vld [vmem:[%s1 + $0x9c] sm:$0xf]
  %v77 = vld [vmem:[%s1 + $0xa0] sm:$0xf]
  %v78 = vld [vmem:[%s1 + $0xa4] sm:$0xf]
  %v79 = vld [vmem:[%s1 + $0xa8] sm:$0xf]
  %v80 = vld [vmem:[%s1 + $0xac] sm:$0xf]
  %v81 = vld [vmem:[%s1 + $0xb0] sm:$0xf]
  %v82 = vld [vmem:[%s1 + $0xb4] sm:$0xf]
  %v83 = vld [vmem:[%s1 + $0xb8] sm:$0xf]
  %v84 = vld [vmem:[%s1 + $0xbc] sm:$0xf]
  %v85 = vld [vmem:[%s1 + $0xc0] sm:$0xf]
  %v86 = vld [vmem:[%s1 + $0xc4] sm:$0xf]
  %v87 = vld [vmem:[%s1 + $0xc8] sm:$0xf]
  %v88 = vld [vmem:[%s1 + $0xcc] sm:$0xf]
  %v89 = vld [vmem:[%s1 + $0xd0] sm:$0xf]
  %v90 = vld [vmem:[%s1 + $0xd4] sm:$0xf]
  %v91 = vld [vmem:[%s1 + $0xd8] sm:$0xf]
  %v92 = vld [vmem:[%s1 + $0xdc] sm:$0xf]
  %v93 = vld [vmem:[%s1 + $0xe0] sm:$0xf]
  %v94 = vld [vmem:[%s1 + $0xe4] sm:$0xf]
  %v95 = vld [vmem:[%s1 + $0xe8] sm:$0xf]
  %v96 = vld [vmem:[%s1 + $0xec] sm:$0xf]
  %v97 = vld [vmem:[%s1 + $0xf0] sm:$0xf]
  %v98 = vld [vmem:[%s1 + $0xf4] sm:$0xf]
  %v99 = vld [vmem:[%s1 + $0xf8] sm:$0xf]
  %v100 = vld [vmem:[%s1 + $0xfc] sm:$0xf]
  %v101 = vld [vmem:[%s1 + $0x100] sm:$0xf]
  %v102 = vld [vmem:[%s1 + $0x104] sm:$0xf]
  %v103 = vld [vmem:[%s1 + $0x108] sm:$0xf]
  %v104 = vld [vmem:[%s1 + $0x10c] sm:$0xf]
  %v105 = vld [vmem:[%s1 + $0x110] sm:$0xf]
  %v106 = vld [vmem:[%s1 + $0x114] sm:$0xf]
  %v107 = vld [vmem:[%s1 + $0x118] sm:$0xf]
  %v108 = vld [vmem:[%s1 + $0x11c] sm:$0xf]
  %v109 = vld [vmem:[%s1 + $0x120] sm:$0xf]
  %v110 = vld [vmem:[%s1 + $0x124] sm:$0xf]
  %v111 = vld [vmem:[%s1 + $0x128] sm:$0xf]
  %v112 = vld [vmem:[%s1 + $0x12c] sm:$0xf]
  %v113 = vld [vmem:[%s1 + $0x130] sm:$0xf]
  %v114 = vld [vmem:[%s1 + $0x134] sm:$0xf]
  %v115 = vld [vmem:[%s1 + $0x138] sm:$0xf]
  %v116 = vld [vmem:[%s1 + $0x13c] sm:$0xf]
  %v117 = vld [vmem:[%s1 + $0x140] sm:$0xf]
  %v118 = vld [vmem:[%s1 + $0x144] sm:$0xf]
  %v119 = vld [vmem:[%s1 + $0x148] sm:$0xf]
  %v120 = vld [vmem:[%s1 + $0x14c] sm:$0xf]
  %v121 = vld [vmem:[%s1 + $0x150] sm:$0xf]
  %v122 = vld [vmem:[%s1 + $0x154] sm:$0xf]
  %v123 = vld [vmem:[%s1 + $0x158] sm:$0xf]
  %v124 = vld [vmem:[%s1 + $0x15c] sm:$0xf]
  %v125 = vld [vmem:[%s1 + $0x160] sm:$0xf]
  %v126 = vld [vmem:[%s1 + $0x164] sm:$0xf]
  %v127 = vld [vmem:[%s1 + $0x168] sm:$0xf]
  %v128 = vld [vmem:[%s1 + $0x16c] sm:$0xf]
  %v129 = vld [vmem:[%s1 + $0x170] sm:$0xf]
  %v130 = vld [vmem:[%s1 + $0x174] sm:$0xf]
  %v131 = vld [vmem:[%s1 + $0x178] sm:$0xf]
  %v132 = vld [vmem:[%s1 + $0x17c] sm:$0xf]
  %v133 = vld [vmem:[%s1 + $0x180] sm:$0xf]
  %v134 = vld [vmem:[%s1 + $0x184] sm:$0xf]
  %v135 = vld [vmem:[%s1 + $0x188] sm:$0xf]
  %v136 = vld [vmem:[%s1 + $0x18c] sm:$0xf]
  %v137 = vld [vmem:[%s1 + $0x190] sm:$0xf]
  %v138 = vld [vmem:[%s1 + $0x194] sm:$0xf]
  %v139 = vld [vmem:[%s1 + $0x198] sm:$0xf]
  %v140 = vld [vmem:[%s1 + $0x19c] sm:$0xf]
  %v141 = vld [vmem:[%s1 + $0x1a0] sm:$0xf]
  %v142 = vld [vmem:[%s1 + $0x1a4] sm:$0xf]
  %v143 = vld [vmem:[%s1 + $0x1a8] sm:$0xf]
  %v144 = vld [vmem:[%s1 + $0x1ac] sm:$0xf]
  %v145 = vld [vmem:[%s1 + $0x1b0] sm:$0xf]
  %v146 = vld [vmem:[%s1 + $0x1b4] sm:$0xf]
  %v147 = vld [vmem:[%s1 + $0x1b8] sm:$0xf]
  %v148 = vld [vmem:[%s1 + $0x1bc] sm:$0xf]
  %v149 = vld [vmem:[%s1 + $0x1c0] sm:$0xf]
  %v150 = vld [vmem:[%s1 + $0x1c4] sm:$0xf]
  %v151 = vld [vmem:[%s1 + $0x1c8] sm:$0xf]
  %v152 = vld [vmem:[%s1 + $0x1cc] sm:$0xf]
  %v153 = vld [vmem:[%s1 + $0x1d0] sm:$0xf]
  %v154 = vld [vmem:[%s1 + $0x1d4] sm:$0xf]
  %v155 = vld [vmem:[%s1 + $0x1d8] sm:$0xf]
  %v156 = vld [vmem:[%s1 + $0x1dc] sm:$0xf]
  %v157 = vld [vmem:[%s1 + $0x1e0] sm:$0xf]
  %v158 = vld [vmem:[%s1 + $0x1e4] sm:$0xf]
  %v159 = vld [vmem:[%s1 + $0x1e8] sm:$0xf]
  %v160 = vld [vmem:[%s1 + $0x1ec] sm:$0xf]
  %v161 = vld [vmem:[%s1 + $0x1f0] sm:$0xf]
  %v162 = vld [vmem:[%s1 + $0x1f4] sm:$0xf]
  %v163 = vld [vmem:[%s1 + $0x1f8] sm:$0xf]
  %v164 = vld [vmem:[%s1 + $0x1fc] sm:$0xf]
  %v165 = vld [vmem:[%s2] sm:$0x1]
  %v167 = vlaneseq
  %v168 = vshrl.u32 %v167, 7
  %v169 = vsub.s32 0, %v168
  %v170 = vrot.slane %v165, %v169
  %v176 = vunpack.c.l.b16 %v33
  %v177 = vunpack.c.h.b16 %v33
  %v178 = vunpack.c.l.b16 %v34
  %v179 = vunpack.c.h.b16 %v34
  %v180 = vunpack.c.l.b16 %v35
  %v181 = vunpack.c.h.b16 %v35
  %v182 = vunpack.c.l.b16 %v36
  %v183 = vunpack.c.h.b16 %v36
  %v184 = vpack.c.b16 %v176, %v176
  %v185 = vpack.c.b16 %v177, %v177
  %v186 = vpack.c.b16 %v178, %v178
  %v187 = vpack.c.b16 %v179, %v179
  %v188 = vpack.c.b16 %v180, %v180
  %v189 = vpack.c.b16 %v181, %v181
  %v190 = vpack.c.b16 %v182, %v182
  %v191 = vpack.c.b16 %v183, %v183
  %v328 = vunpack.c.l.b16 %v37
  %v329 = vunpack.c.l.b16 %v38
  %v330 = vunpack.c.l.b16 %v39
  %v331 = vunpack.c.l.b16 %v40
  %v332 = vunpack.c.l.b16 %v41
  %v333 = vunpack.c.l.b16 %v42
  %v334 = vunpack.c.l.b16 %v43
  %v335 = vunpack.c.l.b16 %v44
  %v336 = vunpack.c.l.b16 %v45
  %v337 = vunpack.c.l.b16 %v46
  %v338 = vunpack.c.l.b16 %v47
  %v339 = vunpack.c.l.b16 %v48
  %v340 = vunpack.c.l.b16 %v49
  %v341 = vunpack.c.l.b16 %v50
  %v342 = vunpack.c.l.b16 %v51
  %v343 = vunpack.c.l.b16 %v52
  %v344 = vunpack.c.l.b16 %v53
  %v345 = vunpack.c.l.b16 %v54
  %v346 = vunpack.c.l.b16 %v55
  %v347 = vunpack.c.l.b16 %v56
  %v348 = vunpack.c.l.b16 %v57
  %v349 = vunpack.c.l.b16 %v58
  %v350 = vunpack.c.l.b16 %v59
  %v351 = vunpack.c.l.b16 %v60
  %v352 = vunpack.c.l.b16 %v61
  %v353 = vunpack.c.l.b16 %v62
  %v354 = vunpack.c.l.b16 %v63
  %v355 = vunpack.c.l.b16 %v64
  %v356 = vunpack.c.l.b16 %v65
  %v357 = vunpack.c.l.b16 %v66
  %v358 = vunpack.c.l.b16 %v67
  %v359 = vunpack.c.l.b16 %v68
  %v360 = vunpack.c.l.b16 %v69
  %v361 = vunpack.c.l.b16 %v70
  %v362 = vunpack.c.l.b16 %v71
  %v363 = vunpack.c.l.b16 %v72
  %v364 = vunpack.c.l.b16 %v73
  %v365 = vunpack.c.l.b16 %v74
  %v366 = vunpack.c.l.b16 %v75
  %v367 = vunpack.c.l.b16 %v76
  %v368 = vunpack.c.l.b16 %v77
  %v369 = vunpack.c.l.b16 %v78
  %v370 = vunpack.c.l.b16 %v79
  %v371 = vunpack.c.l.b16 %v80
  %v372 = vunpack.c.l.b16 %v81
  %v373 = vunpack.c.l.b16 %v82
  %v374 = vunpack.c.l.b16 %v83
  %v375 = vunpack.c.l.b16 %v84
  %v376 = vunpack.c.l.b16 %v85
  %v377 = vunpack.c.l.b16 %v86
  %v378 = vunpack.c.l.b16 %v87
  %v379 = vunpack.c.l.b16 %v88
  %v380 = vunpack.c.l.b16 %v89
  %v381 = vunpack.c.l.b16 %v90
  %v382 = vunpack.c.l.b16 %v91
  %v383 = vunpack.c.l.b16 %v92
  %v384 = vunpack.c.l.b16 %v93
  %v385 = vunpack.c.l.b16 %v94
  %v386 = vunpack.c.l.b16 %v95
  %v387 = vunpack.c.l.b16 %v96
  %v388 = vunpack.c.l.b16 %v97
  %v389 = vunpack.c.l.b16 %v98
  %v390 = vunpack.c.l.b16 %v99
  %v391 = vunpack.c.l.b16 %v100
  %v392 = vunpack.c.l.b16 %v101
  %v393 = vunpack.c.l.b16 %v102
  %v394 = vunpack.c.l.b16 %v103
  %v395 = vunpack.c.l.b16 %v104
  %v396 = vunpack.c.l.b16 %v105
  %v397 = vunpack.c.l.b16 %v106
  %v398 = vunpack.c.l.b16 %v107
  %v399 = vunpack.c.l.b16 %v108
  %v400 = vunpack.c.l.b16 %v109
  %v401 = vunpack.c.l.b16 %v110
  %v402 = vunpack.c.l.b16 %v111
  %v403 = vunpack.c.l.b16 %v112
  %v404 = vunpack.c.l.b16 %v113
  %v405 = vunpack.c.l.b16 %v114
  %v406 = vunpack.c.l.b16 %v115
  %v407 = vunpack.c.l.b16 %v116
  %v408 = vunpack.c.l.b16 %v117
  %v409 = vunpack.c.l.b16 %v118
  %v410 = vunpack.c.l.b16 %v119
  %v411 = vunpack.c.l.b16 %v120
  %v412 = vunpack.c.l.b16 %v121
  %v413 = vunpack.c.l.b16 %v122
  %v414 = vunpack.c.l.b16 %v123
  %v415 = vunpack.c.l.b16 %v124
  %v416 = vunpack.c.l.b16 %v125
  %v417 = vunpack.c.l.b16 %v126
  %v418 = vunpack.c.l.b16 %v127
  %v419 = vunpack.c.l.b16 %v128
  %v420 = vunpack.c.l.b16 %v129
  %v421 = vunpack.c.l.b16 %v130
  %v422 = vunpack.c.l.b16 %v131
  %v423 = vunpack.c.l.b16 %v132
  %v424 = vunpack.c.l.b16 %v133
  %v425 = vunpack.c.l.b16 %v134
  %v426 = vunpack.c.l.b16 %v135
  %v427 = vunpack.c.l.b16 %v136
  %v428 = vunpack.c.l.b16 %v137
  %v429 = vunpack.c.l.b16 %v138
  %v430 = vunpack.c.l.b16 %v139
  %v431 = vunpack.c.l.b16 %v140
  %v432 = vunpack.c.l.b16 %v141
  %v433 = vunpack.c.l.b16 %v142
  %v434 = vunpack.c.l.b16 %v143
  %v435 = vunpack.c.l.b16 %v144
  %v436 = vunpack.c.l.b16 %v145
  %v437 = vunpack.c.l.b16 %v146
  %v438 = vunpack.c.l.b16 %v147
  %v439 = vunpack.c.l.b16 %v148
  %v440 = vunpack.c.l.b16 %v149
  %v441 = vunpack.c.l.b16 %v150
  %v442 = vunpack.c.l.b16 %v151
  %v443 = vunpack.c.l.b16 %v152
  %v444 = vunpack.c.l.b16 %v153
  %v445 = vunpack.c.l.b16 %v154
  %v446 = vunpack.c.l.b16 %v155
  %v447 = vunpack.c.l.b16 %v156
  %v448 = vunpack.c.l.b16 %v157
  %v449 = vunpack.c.l.b16 %v158
  %v450 = vunpack.c.l.b16 %v159
  %v451 = vunpack.c.l.b16 %v160
  %v452 = vunpack.c.l.b16 %v161
  %v453 = vunpack.c.l.b16 %v162
  %v454 = vunpack.c.l.b16 %v163
  %v455 = vunpack.c.l.b16 %v164
  %v456 = vpack.c.b16 %v329, %v328
  %v457 = vpack.c.b16 %v331, %v330
  %v458 = vpack.c.b16 %v333, %v332
  %v459 = vpack.c.b16 %v335, %v334
  %v460 = vpack.c.b16 %v337, %v336
  %v461 = vpack.c.b16 %v339, %v338
  %v462 = vpack.c.b16 %v341, %v340
  %v463 = vpack.c.b16 %v343, %v342
  %v464 = vpack.c.b16 %v345, %v344
  %v465 = vpack.c.b16 %v347, %v346
  %v466 = vpack.c.b16 %v349, %v348
  %v467 = vpack.c.b16 %v351, %v350
  %v468 = vpack.c.b16 %v353, %v352
  %v469 = vpack.c.b16 %v355, %v354
  %v470 = vpack.c.b16 %v357, %v356
  %v471 = vpack.c.b16 %v359, %v358
  %v472 = vpack.c.b16 %v361, %v360
  %v473 = vpack.c.b16 %v363, %v362
  %v474 = vpack.c.b16 %v365, %v364
  %v475 = vpack.c.b16 %v367, %v366
  %v476 = vpack.c.b16 %v369, %v368
  %v477 = vpack.c.b16 %v371, %v370
  %v478 = vpack.c.b16 %v373, %v372
  %v479 = vpack.c.b16 %v375, %v374
  %v480 = vpack.c.b16 %v377, %v376
  %v481 = vpack.c.b16 %v379, %v378
  %v482 = vpack.c.b16 %v381, %v380
  %v483 = vpack.c.b16 %v383, %v382
  %v484 = vpack.c.b16 %v385, %v384
  %v485 = vpack.c.b16 %v387, %v386
  %v486 = vpack.c.b16 %v389, %v388
  %v487 = vpack.c.b16 %v391, %v390
  %v488 = vpack.c.b16 %v393, %v392
  %v489 = vpack.c.b16 %v395, %v394
  %v490 = vpack.c.b16 %v397, %v396
  %v491 = vpack.c.b16 %v399, %v398
  %v492 = vpack.c.b16 %v401, %v400
  %v493 = vpack.c.b16 %v403, %v402
  %v494 = vpack.c.b16 %v405, %v404
  %v495 = vpack.c.b16 %v407, %v406
  %v496 = vpack.c.b16 %v409, %v408
  %v497 = vpack.c.b16 %v411, %v410
  %v498 = vpack.c.b16 %v413, %v412
  %v499 = vpack.c.b16 %v415, %v414
  %v500 = vpack.c.b16 %v417, %v416
  %v501 = vpack.c.b16 %v419, %v418
  %v502 = vpack.c.b16 %v421, %v420
  %v503 = vpack.c.b16 %v423, %v422
  %v504 = vpack.c.b16 %v425, %v424
  %v505 = vpack.c.b16 %v427, %v426
  %v506 = vpack.c.b16 %v429, %v428
  %v507 = vpack.c.b16 %v431, %v430
  %v508 = vpack.c.b16 %v433, %v432
  %v509 = vpack.c.b16 %v435, %v434
  %v510 = vpack.c.b16 %v437, %v436
  %v511 = vpack.c.b16 %v439, %v438
  %v512 = vpack.c.b16 %v441, %v440
  %v513 = vpack.c.b16 %v443, %v442
  %v514 = vpack.c.b16 %v445, %v444
  %v515 = vpack.c.b16 %v447, %v446
  %v516 = vpack.c.b16 %v449, %v448
  %v517 = vpack.c.b16 %v451, %v450
  %v518 = vpack.c.b16 %v453, %v452
  %v519 = vpack.c.b16 %v455, %v454
  %584 = vmatprep.subr.bf16.mxu0 0
  %585 = vmatpush1.bf16.msra.mxu0 %v456
  %586 = vmatprep.subr.bf16.mxu0 0
  %587 = vmatpush1.bf16.msra.mxu0 %v457
  %588 = vmatprep.subr.bf16.mxu0 0
  %589 = vmatpush1.bf16.msra.mxu0 %v458
  %590 = vmatprep.subr.bf16.mxu0 0
  %591 = vmatpush1.bf16.msra.mxu0 %v459
  %592 = vmatprep.subr.bf16.mxu0 0
  %593 = vmatpush1.bf16.msra.mxu0 %v460
  %594 = vmatprep.subr.bf16.mxu0 0
  %595 = vmatpush1.bf16.msra.mxu0 %v461
  %596 = vmatprep.subr.bf16.mxu0 0
  %597 = vmatpush1.bf16.msra.mxu0 %v462
  %598 = vmatprep.subr.bf16.mxu0 0
  %599 = vmatpush1.bf16.msra.mxu0 %v463
  %600 = vmatprep.subr.bf16.mxu0 0
  %601 = vmatpush1.bf16.msra.mxu0 %v464
  %602 = vmatprep.subr.bf16.mxu0 0
  %603 = vmatpush1.bf16.msra.mxu0 %v465
  %604 = vmatprep.subr.bf16.mxu0 0
  %605 = vmatpush1.bf16.msra.mxu0 %v466
  %606 = vmatprep.subr.bf16.mxu0 0
  %607 = vmatpush1.bf16.msra.mxu0 %v467
  %608 = vmatprep.subr.bf16.mxu0 0
  %609 = vmatpush1.bf16.msra.mxu0 %v468
  %610 = vmatprep.subr.bf16.mxu0 0
  %611 = vmatpush1.bf16.msra.mxu0 %v469
  %612 = vmatprep.subr.bf16.mxu0 0
  %613 = vmatpush1.bf16.msra.mxu0 %v470
  %614 = vmatprep.subr.bf16.mxu0 0
  %615 = vmatpush1.bf16.msra.mxu0 %v471
  %616 = vmatprep.mubr.bf16.mxu0 %v185
  %617 = vmatmul.mubr.bf16.gmra.mrb[0].mxu0 %v184
  %v618 = vpop.f32.mrb[0].mxu0
  %v619 = vadd.f32 %v170, %v618
  %v620 = vpop.f32.mrb[0].mxu0
  %v621 = vpop.f32.mrb[0].mxu0
  %v622 = vpop.f32.mrb[0].mxu0
  %623 = vdwg.mxu0
  %624 = vmatprep.subr.bf16.mxu0 0
  %625 = vmatpush1.bf16.msra.mxu0 %v472
  %626 = vmatprep.subr.bf16.mxu0 0
  %627 = vmatpush1.bf16.msra.mxu0 %v473
  %628 = vmatprep.subr.bf16.mxu0 0
  %629 = vmatpush1.bf16.msra.mxu0 %v474
  %630 = vmatprep.subr.bf16.mxu0 0
  %631 = vmatpush1.bf16.msra.mxu0 %v475
  %632 = vmatprep.subr.bf16.mxu0 0
  %633 = vmatpush1.bf16.msra.mxu0 %v476
  %634 = vmatprep.subr.bf16.mxu0 0
  %635 = vmatpush1.bf16.msra.mxu0 %v477
  %636 = vmatprep.subr.bf16.mxu0 0
  %637 = vmatpush1.bf16.msra.mxu0 %v478
  %638 = vmatprep.subr.bf16.mxu0 0
  %639 = vmatpush1.bf16.msra.mxu0 %v479
  %640 = vmatprep.subr.bf16.mxu0 0
  %641 = vmatpush1.bf16.msra.mxu0 %v480
  %642 = vmatprep.subr.bf16.mxu0 0
  %643 = vmatpush1.bf16.msra.mxu0 %v481
  %644 = vmatprep.subr.bf16.mxu0 0
  %645 = vmatpush1.bf16.msra.mxu0 %v482
  %646 = vmatprep.subr.bf16.mxu0 0
  %647 = vmatpush1.bf16.msra.mxu0 %v483
  %648 = vmatprep.subr.bf16.mxu0 0
  %649 = vmatpush1.bf16.msra.mxu0 %v484
  %650 = vmatprep.subr.bf16.mxu0 0
  %651 = vmatpush1.bf16.msra.mxu0 %v485
  %652 = vmatprep.subr.bf16.mxu0 0
  %653 = vmatpush1.bf16.msra.mxu0 %v486
  %654 = vmatprep.subr.bf16.mxu0 0
  %655 = vmatpush1.bf16.msra.mxu0 %v487
  %656 = vmatprep.mubr.bf16.mxu0 %v187
  %657 = vmatmul.mubr.bf16.gmra.mrb[0].mxu0 %v186
  %v658 = vpop.f32.mrb[0].mxu0
  %v659 = vadd.f32 %v619, %v658
  %v660 = vpop.f32.mrb[0].mxu0
  %v661 = vpop.f32.mrb[0].mxu0
  %v662 = vpop.f32.mrb[0].mxu0
  %663 = vdwg.mxu0
  %664 = vmatprep.subr.bf16.mxu0 0
  %665 = vmatpush1.bf16.msra.mxu0 %v488
  %666 = vmatprep.subr.bf16.mxu0 0
  %667 = vmatpush1.bf16.msra.mxu0 %v489
  %668 = vmatprep.subr.bf16.mxu0 0
  %669 = vmatpush1.bf16.msra.mxu0 %v490
  %670 = vmatprep.subr.bf16.mxu0 0
  %671 = vmatpush1.bf16.msra.mxu0 %v491
  %672 = vmatprep.subr.bf16.mxu0 0
  %673 = vmatpush1.bf16.msra.mxu0 %v492
  %674 = vmatprep.subr.bf16.mxu0 0
  %675 = vmatpush1.bf16.msra.mxu0 %v493
  %676 = vmatprep.subr.bf16.mxu0 0
  %677 = vmatpush1.bf16.msra.mxu0 %v494
  %678 = vmatprep.subr.bf16.mxu0 0
  %679 = vmatpush1.bf16.msra.mxu0 %v495
  %680 = vmatprep.subr.bf16.mxu0 0
  %681 = vmatpush1.bf16.msra.mxu0 %v496
  %682 = vmatprep.subr.bf16.mxu0 0
  %683 = vmatpush1.bf16.msra.mxu0 %v497
  %684 = vmatprep.subr.bf16.mxu0 0
  %685 = vmatpush1.bf16.msra.mxu0 %v498
  %686 = vmatprep.subr.bf16.mxu0 0
  %687 = vmatpush1.bf16.msra.mxu0 %v499
  %688 = vmatprep.subr.bf16.mxu0 0
  %689 = vmatpush1.bf16.msra.mxu0 %v500
  %690 = vmatprep.subr.bf16.mxu0 0
  %691 = vmatpush1.bf16.msra.mxu0 %v501
  %692 = vmatprep.subr.bf16.mxu0 0
  %693 = vmatpush1.bf16.msra.mxu0 %v502
  %694 = vmatprep.subr.bf16.mxu0 0
  %695 = vmatpush1.bf16.msra.mxu0 %v503
  %696 = vmatprep.mubr.bf16.mxu0 %v189
  %697 = vmatmul.mubr.bf16.gmra.mrb[0].mxu0 %v188
  %v698 = vpop.f32.mrb[0].mxu0
  %v699 = vadd.f32 %v659, %v698
  %v700 = vpop.f32.mrb[0].mxu0
  %v701 = vpop.f32.mrb[0].mxu0
  %v702 = vpop.f32.mrb[0].mxu0
  %703 = vdwg.mxu0
  %704 = vmatprep.subr.bf16.mxu0 0
  %705 = vmatpush1.bf16.msra.mxu0 %v504
  %706 = vmatprep.subr.bf16.mxu0 0
  %707 = vmatpush1.bf16.msra.mxu0 %v505
  %708 = vmatprep.subr.bf16.mxu0 0
  %709 = vmatpush1.bf16.msra.mxu0 %v506
  %710 = vmatprep.subr.bf16.mxu0 0
  %711 = vmatpush1.bf16.msra.mxu0 %v507
  %712 = vmatprep.subr.bf16.mxu0 0
  %713 = vmatpush1.bf16.msra.mxu0 %v508
  %714 = vmatprep.subr.bf16.mxu0 0
  %715 = vmatpush1.bf16.msra.mxu0 %v509
  %716 = vmatprep.subr.bf16.mxu0 0
  %717 = vmatpush1.bf16.msra.mxu0 %v510
  %718 = vmatprep.subr.bf16.mxu0 0
  %719 = vmatpush1.bf16.msra.mxu0 %v511
  %720 = vmatprep.subr.bf16.mxu0 0
  %721 = vmatpush1.bf16.msra.mxu0 %v512
  %722 = vmatprep.subr.bf16.mxu0 0
  %723 = vmatpush1.bf16.msra.mxu0 %v513
  %724 = vmatprep.subr.bf16.mxu0 0
  %725 = vmatpush1.bf16.msra.mxu0 %v514
  %726 = vmatprep.subr.bf16.mxu0 0
  %727 = vmatpush1.bf16.msra.mxu0 %v515
  %728 = vmatprep.subr.bf16.mxu0 0
  %729 = vmatpush1.bf16.msra.mxu0 %v516
  %730 = vmatprep.subr.bf16.mxu0 0
  %731 = vmatpush1.bf16.msra.mxu0 %v517
  %732 = vmatprep.subr.bf16.mxu0 0
  %733 = vmatpush1.bf16.msra.mxu0 %v518
  %734 = vmatprep.subr.bf16.mxu0 0
  %735 = vmatpush1.bf16.msra.mxu0 %v519
  %736 = vmatprep.mubr.bf16.mxu0 %v191
  %737 = vmatmul.mubr.bf16.gmra.mrb[0].mxu0 %v190
  %v738 = vpop.f32.mrb[0].mxu0
  %v739 = vadd.f32 %v699, %v738
  %v740 = vpop.f32.mrb[0].mxu0
  %v741 = vpop.f32.mrb[0].mxu0
  %v742 = vpop.f32.mrb[0].mxu0
  %743 = vdwg.mxu0
  %v744 = vmax.f32 %v739, 0.0
  %v745 = vpack.c.bf16 %v744, %v744
  %v746 = vld [vmem:[%s3] sm:$0xff]
  %v747 = vld [vmem:[%s3 + $0x8] sm:$0xff]
  %v748 = vld [vmem:[%s3 + $0x10] sm:$0xff]
  %v749 = vld [vmem:[%s3 + $0x18] sm:$0xff]
  %v750 = vld [vmem:[%s3 + $0x20] sm:$0xff]
  %v751 = vld [vmem:[%s3 + $0x28] sm:$0xff]
  %v752 = vld [vmem:[%s3 + $0x30] sm:$0xff]
  %v753 = vld [vmem:[%s3 + $0x38] sm:$0xff]
  %v754 = vld [vmem:[%s3 + $0x40] sm:$0xff]
  %v755 = vld [vmem:[%s3 + $0x48] sm:$0xff]
  %v756 = vld [vmem:[%s3 + $0x50] sm:$0xff]
  %v757 = vld [vmem:[%s3 + $0x58] sm:$0xff]
  %v758 = vld [vmem:[%s3 + $0x60] sm:$0xff]
  %v759 = vld [vmem:[%s3 + $0x68] sm:$0xff]
  %v760 = vld [vmem:[%s3 + $0x70] sm:$0xff]
  %v761 = vld [vmem:[%s3 + $0x78] sm:$0xff]
  %v762 = vld [vmem:[%s4] sm:$0x3]
  %v764 = vlaneseq
  %v765 = vshrl.u32 %v764, 7
  %v766 = vsub.s32 0, %v765
  %v767 = vrot.slane %v762, %v766
  %v768 = vlaneseq
  %v769 = vshrl.u32 %v768, 7
  %v770 = vsub.s32 1, %v769
  %v771 = vrot.slane %v762, %v770
  %v790 = vunpack.c.l.b16 %v746
  %v791 = vunpack.c.h.b16 %v746
  %v792 = vunpack.c.l.b16 %v747
  %v793 = vunpack.c.h.b16 %v747
  %v794 = vunpack.c.l.b16 %v748
  %v795 = vunpack.c.h.b16 %v748
  %v796 = vunpack.c.l.b16 %v749
  %v797 = vunpack.c.h.b16 %v749
  %v798 = vunpack.c.l.b16 %v750
  %v799 = vunpack.c.h.b16 %v750
  %v800 = vunpack.c.l.b16 %v751
  %v801 = vunpack.c.h.b16 %v751
  %v802 = vunpack.c.l.b16 %v752
  %v803 = vunpack.c.h.b16 %v752
  %v804 = vunpack.c.l.b16 %v753
  %v805 = vunpack.c.h.b16 %v753
  %v806 = vunpack.c.l.b16 %v754
  %v807 = vunpack.c.h.b16 %v754
  %v808 = vunpack.c.l.b16 %v755
  %v809 = vunpack.c.h.b16 %v755
  %v810 = vunpack.c.l.b16 %v756
  %v811 = vunpack.c.h.b16 %v756
  %v812 = vunpack.c.l.b16 %v757
  %v813 = vunpack.c.h.b16 %v757
  %v814 = vunpack.c.l.b16 %v758
  %v815 = vunpack.c.h.b16 %v758
  %v816 = vunpack.c.l.b16 %v759
  %v817 = vunpack.c.h.b16 %v759
  %v818 = vunpack.c.l.b16 %v760
  %v819 = vunpack.c.h.b16 %v760
  %v820 = vunpack.c.l.b16 %v761
  %v821 = vunpack.c.h.b16 %v761
  %v822 = vpack.c.b16 %v792, %v790
  %v823 = vpack.c.b16 %v793, %v791
  %v824 = vpack.c.b16 %v796, %v794
  %v825 = vpack.c.b16 %v797, %v795
  %v826 = vpack.c.b16 %v800, %v798
  %v827 = vpack.c.b16 %v801, %v799
  %v828 = vpack.c.b16 %v804, %v802
  %v829 = vpack.c.b16 %v805, %v803
  %v830 = vpack.c.b16 %v808, %v806
  %v831 = vpack.c.b16 %v809, %v807
  %v832 = vpack.c.b16 %v812, %v810
  %v833 = vpack.c.b16 %v813, %v811
  %v834 = vpack.c.b16 %v816, %v814
  %v835 = vpack.c.b16 %v817, %v815
  %v836 = vpack.c.b16 %v820, %v818
  %v837 = vpack.c.b16 %v821, %v819
  %854 = vmatprep.subr.bf16.mxu0 %v823
  %855 = vmatpush1.bf16.msra.mxu0 %v822
  %856 = vmatprep.subr.bf16.mxu0 %v825
  %857 = vmatpush1.bf16.msra.mxu0 %v824
  %858 = vmatprep.subr.bf16.mxu0 %v827
  %859 = vmatpush1.bf16.msra.mxu0 %v826
  %860 = vmatprep.subr.bf16.mxu0 %v829
  %861 = vmatpush1.bf16.msra.mxu0 %v828
  %862 = vmatprep.subr.bf16.mxu0 %v831
  %863 = vmatpush1.bf16.msra.mxu0 %v830
  %864 = vmatprep.subr.bf16.mxu0 %v833
  %865 = vmatpush1.bf16.msra.mxu0 %v832
  %866 = vmatprep.subr.bf16.mxu0 %v835
  %867 = vmatpush1.bf16.msra.mxu0 %v834
  %868 = vmatprep.subr.bf16.mxu0 %v837
  %869 = vmatpush1.bf16.msra.mxu0 %v836
  %870 = vmatprep.subr.bf16.mxu0 0
  %871 = vmatpush1.bf16.msra.mxu0 0
  %872 = vmatprep.subr.bf16.mxu0 0
  %873 = vmatpush1.bf16.msra.mxu0 0
  %874 = vmatprep.subr.bf16.mxu0 0
  %875 = vmatpush1.bf16.msra.mxu0 0
  %876 = vmatprep.subr.bf16.mxu0 0
  %877 = vmatpush1.bf16.msra.mxu0 0
  %878 = vmatprep.subr.bf16.mxu0 0
  %879 = vmatpush1.bf16.msra.mxu0 0
  %880 = vmatprep.subr.bf16.mxu0 0
  %881 = vmatpush1.bf16.msra.mxu0 0
  %882 = vmatprep.subr.bf16.mxu0 0
  %883 = vmatpush1.bf16.msra.mxu0 0
  %884 = vmatprep.subr.bf16.mxu0 0
  %885 = vmatpush1.bf16.msra.mxu0 0
  %886 = vmatprep.mubr.bf16.mxu0 0
  %887 = vmatmul.mubr.bf16.gmra.mrb[0].mxu0 %v745
  %v888 = vpop.f32.mrb[0].mxu0
  %v889 = vadd.f32 %v767, %v888
  %v890 = vpop.f32.mrb[0].mxu0
  %v891 = vadd.f32 %v771, %v890
  %v892 = vpop.f32.mrb[0].mxu0
  %v893 = vpop.f32.mrb[0].mxu0
  %894 = vdwg.mxu0
  %v895 = vmax.f32 %v889, 0.0
  %v896 = vmax.f32 %v891, 0.0
  %v897 = vpack.c.bf16 %v895, %v895
  %v898 = vpack.c.bf16 %v896, %v896
  %v899 = vld [vmem:[%s5] sm:$0xff]
  %v900 = vld [vmem:[%s5 + $0x8] sm:$0xff]
  %v901 = vld [vmem:[%s5 + $0x10] sm:$0xff]
  %v902 = vld [vmem:[%s5 + $0x18] sm:$0xff]
  %v903 = vld [vmem:[%s5 + $0x20] sm:$0xff]
  %v904 = vld [vmem:[%s5 + $0x28] sm:$0xff]
  %v905 = vld [vmem:[%s5 + $0x30] sm:$0xff]
  %v906 = vld [vmem:[%s5 + $0x38] sm:$0xff]
  %v907 = vld [vmem:[%s5 + $0x40] sm:$0xff]
  %v908 = vld [vmem:[%s5 + $0x48] sm:$0xff]
  %v909 = vld [vmem:[%s5 + $0x50] sm:$0xff]
  %v910 = vld [vmem:[%s5 + $0x58] sm:$0xff]
  %v911 = vld [vmem:[%s5 + $0x60] sm:$0xff]
  %v912 = vld [vmem:[%s5 + $0x68] sm:$0xff]
  %v913 = vld [vmem:[%s5 + $0x70] sm:$0xff]
  %v914 = vld [vmem:[%s5 + $0x78] sm:$0xff]
  %v915 = vld [vmem:[%s5 + $0x80] sm:$0xff]
  %v916 = vld [vmem:[%s5 + $0x88] sm:$0xff]
  %v917 = vld [vmem:[%s5 + $0x90] sm:$0xff]
  %v918 = vld [vmem:[%s5 + $0x98] sm:$0xff]
  %v919 = vld [vmem:[%s5 + $0xa0] sm:$0xff]
  %v920 = vld [vmem:[%s5 + $0xa8] sm:$0xff]
  %v921 = vld [vmem:[%s5 + $0xb0] sm:$0xff]
  %v922 = vld [vmem:[%s5 + $0xb8] sm:$0xff]
  %v923 = vld [vmem:[%s5 + $0xc0] sm:$0xff]
  %v924 = vld [vmem:[%s5 + $0xc8] sm:$0xff]
  %v925 = vld [vmem:[%s5 + $0xd0] sm:$0xff]
  %v926 = vld [vmem:[%s5 + $0xd8] sm:$0xff]
  %v927 = vld [vmem:[%s5 + $0xe0] sm:$0xff]
  %v928 = vld [vmem:[%s5 + $0xe8] sm:$0xff]
  %v929 = vld [vmem:[%s5 + $0xf0] sm:$0xff]
  %v930 = vld [vmem:[%s5 + $0xf8] sm:$0xff]
  %v931 = vld [vmem:[%s5 + $0x100] sm:$0xff]
  %v932 = vld [vmem:[%s5 + $0x108] sm:$0xff]
  %v933 = vld [vmem:[%s5 + $0x110] sm:$0xff]
  %v934 = vld [vmem:[%s5 + $0x118] sm:$0xff]
  %v935 = vld [vmem:[%s5 + $0x120] sm:$0xff]
  %v936 = vld [vmem:[%s5 + $0x128] sm:$0xff]
  %v937 = vld [vmem:[%s5 + $0x130] sm:$0xff]
  %v938 = vld [vmem:[%s5 + $0x138] sm:$0xff]
  %v939 = vld [vmem:[%s5 + $0x140] sm:$0xff]
  %v940 = vld [vmem:[%s5 + $0x148] sm:$0xff]
  %v941 = vld [vmem:[%s5 + $0x150] sm:$0xff]
  %v942 = vld [vmem:[%s5 + $0x158] sm:$0xff]
  %v943 = vld [vmem:[%s5 + $0x160] sm:$0xff]
  %v944 = vld [vmem:[%s5 + $0x168] sm:$0xff]
  %v945 = vld [vmem:[%s5 + $0x170] sm:$0xff]
  %v946 = vld [vmem:[%s5 + $0x178] sm:$0xff]
  %v947 = vld [vmem:[%s5 + $0x180] sm:$0xff]
  %v948 = vld [vmem:[%s5 + $0x188] sm:$0xff]
  %v949 = vld [vmem:[%s5 + $0x190] sm:$0xff]
  %v950 = vld [vmem:[%s5 + $0x198] sm:$0xff]
  %v951 = vld [vmem:[%s5 + $0x1a0] sm:$0xff]
  %v952 = vld [vmem:[%s5 + $0x1a8] sm:$0xff]
  %v953 = vld [vmem:[%s5 + $0x1b0] sm:$0xff]
  %v954 = vld [vmem:[%s5 + $0x1b8] sm:$0xff]
  %v955 = vld [vmem:[%s5 + $0x1c0] sm:$0xff]
  %v956 = vld [vmem:[%s5 + $0x1c8] sm:$0xff]
  %v957 = vld [vmem:[%s5 + $0x1d0] sm:$0xff]
  %v958 = vld [vmem:[%s5 + $0x1d8] sm:$0xff]
  %v959 = vld [vmem:[%s5 + $0x1e0] sm:$0xff]
  %v960 = vld [vmem:[%s5 + $0x1e8] sm:$0xff]
  %v961 = vld [vmem:[%s5 + $0x1f0] sm:$0xff]
  %v962 = vld [vmem:[%s5 + $0x1f8] sm:$0xff]
  %v963 = vld [vmem:[%s6] sm:$0xf]
  %v965 = vlaneseq
  %v966 = vshrl.u32 %v965, 7
  %v967 = vsub.s32 0, %v966
  %v968 = vrot.slane %v963, %v967
  %v969 = vlaneseq
  %v970 = vshrl.u32 %v969, 7
  %v971 = vsub.s32 1, %v970
  %v972 = vrot.slane %v963, %v971
  %v973 = vlaneseq
  %v974 = vshrl.u32 %v973, 7
  %v975 = vsub.s32 2, %v974
  %v976 = vrot.slane %v963, %v975
  %v977 = vlaneseq
  %v978 = vshrl.u32 %v977, 7
  %v979 = vsub.s32 3, %v978
  %v980 = vrot.slane %v963, %v979
  %v1049 = vunpack.c.l.b16 %v899
  %v1050 = vunpack.c.h.b16 %v899
  %v1051 = vunpack.c.l.b16 %v900
  %v1052 = vunpack.c.h.b16 %v900
  %v1053 = vunpack.c.l.b16 %v901
  %v1054 = vunpack.c.h.b16 %v901
  %v1055 = vunpack.c.l.b16 %v902
  %v1056 = vunpack.c.h.b16 %v902
  %v1057 = vunpack.c.l.b16 %v903
  %v1058 = vunpack.c.h.b16 %v903
  %v1059 = vunpack.c.l.b16 %v904
  %v1060 = vunpack.c.h.b16 %v904
  %v1061 = vunpack.c.l.b16 %v905
  %v1062 = vunpack.c.h.b16 %v905
  %v1063 = vunpack.c.l.b16 %v906
  %v1064 = vunpack.c.h.b16 %v906
  %v1065 = vunpack.c.l.b16 %v907
  %v1066 = vunpack.c.h.b16 %v907
  %v1067 = vunpack.c.l.b16 %v908
  %v1068 = vunpack.c.h.b16 %v908
  %v1069 = vunpack.c.l.b16 %v909
  %v1070 = vunpack.c.h.b16 %v909
  %v1071 = vunpack.c.l.b16 %v910
  %v1072 = vunpack.c.h.b16 %v910
  %v1073 = vunpack.c.l.b16 %v911
  %v1074 = vunpack.c.h.b16 %v911
  %v1075 = vunpack.c.l.b16 %v912
  %v1076 = vunpack.c.h.b16 %v912
  %v1077 = vunpack.c.l.b16 %v913
  %v1078 = vunpack.c.h.b16 %v913
  %v1079 = vunpack.c.l.b16 %v914
  %v1080 = vunpack.c.h.b16 %v914
  %v1081 = vunpack.c.l.b16 %v915
  %v1082 = vunpack.c.h.b16 %v915
  %v1083 = vunpack.c.l.b16 %v916
  %v1084 = vunpack.c.h.b16 %v916
  %v1085 = vunpack.c.l.b16 %v917
  %v1086 = vunpack.c.h.b16 %v917
  %v1087 = vunpack.c.l.b16 %v918
  %v1088 = vunpack.c.h.b16 %v918
  %v1089 = vunpack.c.l.b16 %v919
  %v1090 = vunpack.c.h.b16 %v919
  %v1091 = vunpack.c.l.b16 %v920
  %v1092 = vunpack.c.h.b16 %v920
  %v1093 = vunpack.c.l.b16 %v921
  %v1094 = vunpack.c.h.b16 %v921
  %v1095 = vunpack.c.l.b16 %v922
  %v1096 = vunpack.c.h.b16 %v922
  %v1097 = vunpack.c.l.b16 %v923
  %v1098 = vunpack.c.h.b16 %v923
  %v1099 = vunpack.c.l.b16 %v924
  %v1100 = vunpack.c.h.b16 %v924
  %v1101 = vunpack.c.l.b16 %v925
  %v1102 = vunpack.c.h.b16 %v925
  %v1103 = vunpack.c.l.b16 %v926
  %v1104 = vunpack.c.h.b16 %v926
  %v1105 = vunpack.c.l.b16 %v927
  %v1106 = vunpack.c.h.b16 %v927
  %v1107 = vunpack.c.l.b16 %v928
  %v1108 = vunpack.c.h.b16 %v928
  %v1109 = vunpack.c.l.b16 %v929
  %v1110 = vunpack.c.h.b16 %v929
  %v1111 = vunpack.c.l.b16 %v930
  %v1112 = vunpack.c.h.b16 %v930
  %v1113 = vunpack.c.l.b16 %v931
  %v1114 = vunpack.c.h.b16 %v931
  %v1115 = vunpack.c.l.b16 %v932
  %v1116 = vunpack.c.h.b16 %v932
  %v1117 = vunpack.c.l.b16 %v933
  %v1118 = vunpack.c.h.b16 %v933
  %v1119 = vunpack.c.l.b16 %v934
  %v1120 = vunpack.c.h.b16 %v934
  %v1121 = vunpack.c.l.b16 %v935
  %v1122 = vunpack.c.h.b16 %v935
  %v1123 = vunpack.c.l.b16 %v936
  %v1124 = vunpack.c.h.b16 %v936
  %v1125 = vunpack.c.l.b16 %v937
  %v1126 = vunpack.c.h.b16 %v937
  %v1127 = vunpack.c.l.b16 %v938
  %v1128 = vunpack.c.h.b16 %v938
  %v1129 = vunpack.c.l.b16 %v939
  %v1130 = vunpack.c.h.b16 %v939
  %v1131 = vunpack.c.l.b16 %v940
  %v1132 = vunpack.c.h.b16 %v940
  %v1133 = vunpack.c.l.b16 %v941
  %v1134 = vunpack.c.h.b16 %v941
  %v1135 = vunpack.c.l.b16 %v942
  %v1136 = vunpack.c.h.b16 %v942
  %v1137 = vunpack.c.l.b16 %v943
  %v1138 = vunpack.c.h.b16 %v943
  %v1139 = vunpack.c.l.b16 %v944
  %v1140 = vunpack.c.h.b16 %v944
  %v1141 = vunpack.c.l.b16 %v945
  %v1142 = vunpack.c.h.b16 %v945
  %v1143 = vunpack.c.l.b16 %v946
  %v1144 = vunpack.c.h.b16 %v946
  %v1145 = vunpack.c.l.b16 %v947
  %v1146 = vunpack.c.h.b16 %v947
  %v1147 = vunpack.c.l.b16 %v948
  %v1148 = vunpack.c.h.b16 %v948
  %v1149 = vunpack.c.l.b16 %v949
  %v1150 = vunpack.c.h.b16 %v949
  %v1151 = vunpack.c.l.b16 %v950
  %v1152 = vunpack.c.h.b16 %v950
  %v1153 = vunpack.c.l.b16 %v951
  %v1154 = vunpack.c.h.b16 %v951
  %v1155 = vunpack.c.l.b16 %v952
  %v1156 = vunpack.c.h.b16 %v952
  %v1157 = vunpack.c.l.b16 %v953
  %v1158 = vunpack.c.h.b16 %v953
  %v1159 = vunpack.c.l.b16 %v954
  %v1160 = vunpack.c.h.b16 %v954
  %v1161 = vunpack.c.l.b16 %v955
  %v1162 = vunpack.c.h.b16 %v955
  %v1163 = vunpack.c.l.b16 %v956
  %v1164 = vunpack.c.h.b16 %v956
  %v1165 = vunpack.c.l.b16 %v957
  %v1166 = vunpack.c.h.b16 %v957
  %v1167 = vunpack.c.l.b16 %v958
  %v1168 = vunpack.c.h.b16 %v958
  %v1169 = vunpack.c.l.b16 %v959
  %v1170 = vunpack.c.h.b16 %v959
  %v1171 = vunpack.c.l.b16 %v960
  %v1172 = vunpack.c.h.b16 %v960
  %v1173 = vunpack.c.l.b16 %v961
  %v1174 = vunpack.c.h.b16 %v961
  %v1175 = vunpack.c.l.b16 %v962
  %v1176 = vunpack.c.h.b16 %v962
  %v1177 = vpack.c.b16 %v1053, %v1049
  %v1178 = vpack.c.b16 %v1054, %v1050
  %v1179 = vpack.c.b16 %v1055, %v1051
  %v1180 = vpack.c.b16 %v1056, %v1052
  %v1181 = vpack.c.b16 %v1061, %v1057
  %v1182 = vpack.c.b16 %v1062, %v1058
  %v1183 = vpack.c.b16 %v1063, %v1059
  %v1184 = vpack.c.b16 %v1064, %v1060
  %v1185 = vpack.c.b16 %v1069, %v1065
  %v1186 = vpack.c.b16 %v1070, %v1066
  %v1187 = vpack.c.b16 %v1071, %v1067
  %v1188 = vpack.c.b16 %v1072, %v1068
  %v1189 = vpack.c.b16 %v1077, %v1073
  %v1190 = vpack.c.b16 %v1078, %v1074
  %v1191 = vpack.c.b16 %v1079, %v1075
  %v1192 = vpack.c.b16 %v1080, %v1076
  %v1193 = vpack.c.b16 %v1085, %v1081
  %v1194 = vpack.c.b16 %v1086, %v1082
  %v1195 = vpack.c.b16 %v1087, %v1083
  %v1196 = vpack.c.b16 %v1088, %v1084
  %v1197 = vpack.c.b16 %v1093, %v1089
  %v1198 = vpack.c.b16 %v1094, %v1090
  %v1199 = vpack.c.b16 %v1095, %v1091
  %v1200 = vpack.c.b16 %v1096, %v1092
  %v1201 = vpack.c.b16 %v1101, %v1097
  %v1202 = vpack.c.b16 %v1102, %v1098
  %v1203 = vpack.c.b16 %v1103, %v1099
  %v1204 = vpack.c.b16 %v1104, %v1100
  %v1205 = vpack.c.b16 %v1109, %v1105
  %v1206 = vpack.c.b16 %v1110, %v1106
  %v1207 = vpack.c.b16 %v1111, %v1107
  %v1208 = vpack.c.b16 %v1112, %v1108
  %v1209 = vpack.c.b16 %v1117, %v1113
  %v1210 = vpack.c.b16 %v1118, %v1114
  %v1211 = vpack.c.b16 %v1119, %v1115
  %v1212 = vpack.c.b16 %v1120, %v1116
  %v1213 = vpack.c.b16 %v1125, %v1121
  %v1214 = vpack.c.b16 %v1126, %v1122
  %v1215 = vpack.c.b16 %v1127, %v1123
  %v1216 = vpack.c.b16 %v1128, %v1124
  %v1217 = vpack.c.b16 %v1133, %v1129
  %v1218 = vpack.c.b16 %v1134, %v1130
  %v1219 = vpack.c.b16 %v1135, %v1131
  %v1220 = vpack.c.b16 %v1136, %v1132
  %v1221 = vpack.c.b16 %v1141, %v1137
  %v1222 = vpack.c.b16 %v1142, %v1138
  %v1223 = vpack.c.b16 %v1143, %v1139
  %v1224 = vpack.c.b16 %v1144, %v1140
  %v1225 = vpack.c.b16 %v1149, %v1145
  %v1226 = vpack.c.b16 %v1150, %v1146
  %v1227 = vpack.c.b16 %v1151, %v1147
  %v1228 = vpack.c.b16 %v1152, %v1148
  %v1229 = vpack.c.b16 %v1157, %v1153
  %v1230 = vpack.c.b16 %v1158, %v1154
  %v1231 = vpack.c.b16 %v1159, %v1155
  %v1232 = vpack.c.b16 %v1160, %v1156
  %v1233 = vpack.c.b16 %v1165, %v1161
  %v1234 = vpack.c.b16 %v1166, %v1162
  %v1235 = vpack.c.b16 %v1167, %v1163
  %v1236 = vpack.c.b16 %v1168, %v1164
  %v1237 = vpack.c.b16 %v1173, %v1169
  %v1238 = vpack.c.b16 %v1174, %v1170
  %v1239 = vpack.c.b16 %v1175, %v1171
  %v1240 = vpack.c.b16 %v1176, %v1172
  %1305 = vmatprep.subr.bf16.mxu0 %v1178
  %1306 = vmatpush1.bf16.msra.mxu0 %v1177
  %1307 = vmatprep.subr.bf16.mxu0 %v1182
  %1308 = vmatpush1.bf16.msra.mxu0 %v1181
  %1309 = vmatprep.subr.bf16.mxu0 %v1186
  %1310 = vmatpush1.bf16.msra.mxu0 %v1185
  %1311 = vmatprep.subr.bf16.mxu0 %v1190
  %1312 = vmatpush1.bf16.msra.mxu0 %v1189
  %1313 = vmatprep.subr.bf16.mxu0 %v1194
  %1314 = vmatpush1.bf16.msra.mxu0 %v1193
  %1315 = vmatprep.subr.bf16.mxu0 %v1198
  %1316 = vmatpush1.bf16.msra.mxu0 %v1197
  %1317 = vmatprep.subr.bf16.mxu0 %v1202
  %1318 = vmatpush1.bf16.msra.mxu0 %v1201
  %1319 = vmatprep.subr.bf16.mxu0 %v1206
  %1320 = vmatpush1.bf16.msra.mxu0 %v1205
  %1321 = vmatprep.subr.bf16.mxu0 %v1210
  %1322 = vmatpush1.bf16.msra.mxu0 %v1209
  %1323 = vmatprep.subr.bf16.mxu0 %v1214
  %1324 = vmatpush1.bf16.msra.mxu0 %v1213
  %1325 = vmatprep.subr.bf16.mxu0 %v1218
  %1326 = vmatpush1.bf16.msra.mxu0 %v1217
  %1327 = vmatprep.subr.bf16.mxu0 %v1222
  %1328 = vmatpush1.bf16.msra.mxu0 %v1221
  %1329 = vmatprep.subr.bf16.mxu0 %v1226
  %1330 = vmatpush1.bf16.msra.mxu0 %v1225
  %1331 = vmatprep.subr.bf16.mxu0 %v1230
  %1332 = vmatpush1.bf16.msra.mxu0 %v1229
  %1333 = vmatprep.subr.bf16.mxu0 %v1234
  %1334 = vmatpush1.bf16.msra.mxu0 %v1233
  %1335 = vmatprep.subr.bf16.mxu0 %v1238
  %1336 = vmatpush1.bf16.msra.mxu0 %v1237
  %1337 = vmatprep.mubr.bf16.mxu0 %v898
  %1338 = vmatmul.mubr.bf16.gmra.mrb[0].mxu0 %v897
  %v1339 = vpop.f32.mrb[0].mxu0
  %v1340 = vadd.f32 %v968, %v1339
  %v1341 = vpop.f32.mrb[0].mxu0
  %v1342 = vadd.f32 %v972, %v1341
  %v1343 = vpop.f32.mrb[0].mxu0
  %v1344 = vpop.f32.mrb[0].mxu0
  %1345 = vdwg.mxu0
  %1346 = vmatprep.subr.bf16.mxu0 %v1180
  %1347 = vmatpush1.bf16.msra.mxu0 %v1179
  %1348 = vmatprep.subr.bf16.mxu0 %v1184
  %1349 = vmatpush1.bf16.msra.mxu0 %v1183
  %1350 = vmatprep.subr.bf16.mxu0 %v1188
  %1351 = vmatpush1.bf16.msra.mxu0 %v1187
  %1352 = vmatprep.subr.bf16.mxu0 %v1192
  %1353 = vmatpush1.bf16.msra.mxu0 %v1191
  %1354 = vmatprep.subr.bf16.mxu0 %v1196
  %1355 = vmatpush1.bf16.msra.mxu0 %v1195
  %1356 = vmatprep.subr.bf16.mxu0 %v1200
  %1357 = vmatpush1.bf16.msra.mxu0 %v1199
  %1358 = vmatprep.subr.bf16.mxu0 %v1204
  %1359 = vmatpush1.bf16.msra.mxu0 %v1203
  %1360 = vmatprep.subr.bf16.mxu0 %v1208
  %1361 = vmatpush1.bf16.msra.mxu0 %v1207
  %1362 = vmatprep.subr.bf16.mxu0 %v1212
  %1363 = vmatpush1.bf16.msra.mxu0 %v1211
  %1364 = vmatprep.subr.bf16.mxu0 %v1216
  %1365 = vmatpush1.bf16.msra.mxu0 %v1215
  %1366 = vmatprep.subr.bf16.mxu0 %v1220
  %1367 = vmatpush1.bf16.msra.mxu0 %v1219
  %1368 = vmatprep.subr.bf16.mxu0 %v1224
  %1369 = vmatpush1.bf16.msra.mxu0 %v1223
  %1370 = vmatprep.subr.bf16.mxu0 %v1228
  %1371 = vmatpush1.bf16.msra.mxu0 %v1227
  %1372 = vmatprep.subr.bf16.mxu0 %v1232
  %1373 = vmatpush1.bf16.msra.mxu0 %v1231
  %1374 = vmatprep.subr.bf16.mxu0 %v1236
  %1375 = vmatpush1.bf16.msra.mxu0 %v1235
  %1376 = vmatprep.subr.bf16.mxu0 %v1240
  %1377 = vmatpush1.bf16.msra.mxu0 %v1239
  %1378 = vmatprep.mubr.bf16.mxu0 %v898
  %1379 = vmatmul.mubr.bf16.gmra.mrb[0].mxu0 %v897
  %v1380 = vpop.f32.mrb[0].mxu0
  %v1381 = vadd.f32 %v976, %v1380
  %v1382 = vpop.f32.mrb[0].mxu0
  %v1383 = vadd.f32 %v980, %v1382
  %v1384 = vpop.f32.mrb[0].mxu0
  %v1385 = vpop.f32.mrb[0].mxu0
  %1386 = vdwg.mxu0
  %v1387 = vmax.f32 %v1340, 0.0
  %v1388 = vmax.f32 %v1342, 0.0
  %v1389 = vmax.f32 %v1381, 0.0
  %v1390 = vmax.f32 %v1383, 0.0
  %v1391 = vpack.c.bf16 %v1387, %v1387
  %v1392 = vpack.c.bf16 %v1388, %v1388
  %v1393 = vpack.c.bf16 %v1389, %v1389
  %v1394 = vpack.c.bf16 %v1390, %v1390
  %v1395 = vld [vmem:[%s7] sm:$0xf]
  %v1396 = vld [vmem:[%s7 + $0x4] sm:$0xf]
  %v1397 = vld [vmem:[%s7 + $0x8] sm:$0xf]
  %v1398 = vld [vmem:[%s7 + $0xc] sm:$0xf]
  %v1399 = vld [vmem:[%s7 + $0x10] sm:$0xf]
  %v1400 = vld [vmem:[%s7 + $0x14] sm:$0xf]
  %v1401 = vld [vmem:[%s7 + $0x18] sm:$0xf]
  %v1402 = vld [vmem:[%s7 + $0x1c] sm:$0xf]
  %v1403 = vld [vmem:[%s7 + $0x20] sm:$0xf]
  %v1404 = vld [vmem:[%s7 + $0x24] sm:$0xf]
  %v1405 = vld [vmem:[%s7 + $0x28] sm:$0xf]
  %v1406 = vld [vmem:[%s7 + $0x2c] sm:$0xf]
  %v1407 = vld [vmem:[%s7 + $0x30] sm:$0xf]
  %v1408 = vld [vmem:[%s7 + $0x34] sm:$0xf]
  %v1409 = vld [vmem:[%s7 + $0x38] sm:$0xf]
  %v1410 = vld [vmem:[%s7 + $0x3c] sm:$0xf]
  %v1411 = vld [vmem:[%s7 + $0x40] sm:$0xf]
  %v1412 = vld [vmem:[%s7 + $0x44] sm:$0xf]
  %v1413 = vld [vmem:[%s7 + $0x48] sm:$0xf]
  %v1414 = vld [vmem:[%s7 + $0x4c] sm:$0xf]
  %v1415 = vld [vmem:[%s7 + $0x50] sm:$0xf]
  %v1416 = vld [vmem:[%s7 + $0x54] sm:$0xf]
  %v1417 = vld [vmem:[%s7 + $0x58] sm:$0xf]
  %v1418 = vld [vmem:[%s7 + $0x5c] sm:$0xf]
  %v1419 = vld [vmem:[%s7 + $0x60] sm:$0xf]
  %v1420 = vld [vmem:[%s7 + $0x64] sm:$0xf]
  %v1421 = vld [vmem:[%s7 + $0x68] sm:$0xf]
  %v1422 = vld [vmem:[%s7 + $0x6c] sm:$0xf]
  %v1423 = vld [vmem:[%s7 + $0x70] sm:$0xf]
  %v1424 = vld [vmem:[%s7 + $0x74] sm:$0xf]
  %v1425 = vld [vmem:[%s7 + $0x78] sm:$0xf]
  %v1426 = vld [vmem:[%s7 + $0x7c] sm:$0xf]
  %v1427 = vld [vmem:[%s7 + $0x80] sm:$0xf]
  %v1428 = vld [vmem:[%s7 + $0x84] sm:$0xf]
  %v1429 = vld [vmem:[%s7 + $0x88] sm:$0xf]
  %v1430 = vld [vmem:[%s7 + $0x8c] sm:$0xf]
  %v1431 = vld [vmem:[%s7 + $0x90] sm:$0xf]
  %v1432 = vld [vmem:[%s7 + $0x94] sm:$0xf]
  %v1433 = vld [vmem:[%s7 + $0x98] sm:$0xf]
  %v1434 = vld [vmem:[%s7 + $0x9c] sm:$0xf]
  %v1435 = vld [vmem:[%s7 + $0xa0] sm:$0xf]
  %v1436 = vld [vmem:[%s7 + $0xa4] sm:$0xf]
  %v1437 = vld [vmem:[%s7 + $0xa8] sm:$0xf]
  %v1438 = vld [vmem:[%s7 + $0xac] sm:$0xf]
  %v1439 = vld [vmem:[%s7 + $0xb0] sm:$0xf]
  %v1440 = vld [vmem:[%s7 + $0xb4] sm:$0xf]
  %v1441 = vld [vmem:[%s7 + $0xb8] sm:$0xf]
  %v1442 = vld [vmem:[%s7 + $0xbc] sm:$0xf]
  %v1443 = vld [vmem:[%s7 + $0xc0] sm:$0xf]
  %v1444 = vld [vmem:[%s7 + $0xc4] sm:$0xf]
  %v1445 = vld [vmem:[%s7 + $0xc8] sm:$0xf]
  %v1446 = vld [vmem:[%s7 + $0xcc] sm:$0xf]
  %v1447 = vld [vmem:[%s7 + $0xd0] sm:$0xf]
  %v1448 = vld [vmem:[%s7 + $0xd4] sm:$0xf]
  %v1449 = vld [vmem:[%s7 + $0xd8] sm:$0xf]
  %v1450 = vld [vmem:[%s7 + $0xdc] sm:$0xf]
  %v1451 = vld [vmem:[%s7 + $0xe0] sm:$0xf]
  %v1452 = vld [vmem:[%s7 + $0xe4] sm:$0xf]
  %v1453 = vld [vmem:[%s7 + $0xe8] sm:$0xf]
  %v1454 = vld [vmem:[%s7 + $0xec] sm:$0xf]
  %v1455 = vld [vmem:[%s7 + $0xf0] sm:$0xf]
  %v1456 = vld [vmem:[%s7 + $0xf4] sm:$0xf]
  %v1457 = vld [vmem:[%s7 + $0xf8] sm:$0xf]
  %v1458 = vld [vmem:[%s7 + $0xfc] sm:$0xf]
  %v1459 = vld [vmem:[%s8] sm:$0x1]
  %v1461 = vlaneseq
  %v1462 = vshrl.u32 %v1461, 7
  %v1463 = vsub.s32 0, %v1462
  %v1464 = vrot.slane %v1459, %v1463
  %v1530 = vunpack.c.l.b16 %v1395
  %v1531 = vunpack.c.l.b16 %v1396
  %v1532 = vunpack.c.l.b16 %v1397
  %v1533 = vunpack.c.l.b16 %v1398
  %v1534 = vunpack.c.l.b16 %v1399
  %v1535 = vunpack.c.l.b16 %v1400
  %v1536 = vunpack.c.l.b16 %v1401
  %v1537 = vunpack.c.l.b16 %v1402
  %v1538 = vunpack.c.l.b16 %v1403
  %v1539 = vunpack.c.l.b16 %v1404
  %v1540 = vunpack.c.l.b16 %v1405
  %v1541 = vunpack.c.l.b16 %v1406
  %v1542 = vunpack.c.l.b16 %v1407
  %v1543 = vunpack.c.l.b16 %v1408
  %v1544 = vunpack.c.l.b16 %v1409
  %v1545 = vunpack.c.l.b16 %v1410
  %v1546 = vunpack.c.l.b16 %v1411
  %v1547 = vunpack.c.l.b16 %v1412
  %v1548 = vunpack.c.l.b16 %v1413
  %v1549 = vunpack.c.l.b16 %v1414
  %v1550 = vunpack.c.l.b16 %v1415
  %v1551 = vunpack.c.l.b16 %v1416
  %v1552 = vunpack.c.l.b16 %v1417
  %v1553 = vunpack.c.l.b16 %v1418
  %v1554 = vunpack.c.l.b16 %v1419
  %v1555 = vunpack.c.l.b16 %v1420
  %v1556 = vunpack.c.l.b16 %v1421
  %v1557 = vunpack.c.l.b16 %v1422
  %v1558 = vunpack.c.l.b16 %v1423
  %v1559 = vunpack.c.l.b16 %v1424
  %v1560 = vunpack.c.l.b16 %v1425
  %v1561 = vunpack.c.l.b16 %v1426
  %v1562 = vunpack.c.l.b16 %v1427
  %v1563 = vunpack.c.l.b16 %v1428
  %v1564 = vunpack.c.l.b16 %v1429
  %v1565 = vunpack.c.l.b16 %v1430
  %v1566 = vunpack.c.l.b16 %v1431
  %v1567 = vunpack.c.l.b16 %v1432
  %v1568 = vunpack.c.l.b16 %v1433
  %v1569 = vunpack.c.l.b16 %v1434
  %v1570 = vunpack.c.l.b16 %v1435
  %v1571 = vunpack.c.l.b16 %v1436
  %v1572 = vunpack.c.l.b16 %v1437
  %v1573 = vunpack.c.l.b16 %v1438
  %v1574 = vunpack.c.l.b16 %v1439
  %v1575 = vunpack.c.l.b16 %v1440
  %v1576 = vunpack.c.l.b16 %v1441
  %v1577 = vunpack.c.l.b16 %v1442
  %v1578 = vunpack.c.l.b16 %v1443
  %v1579 = vunpack.c.l.b16 %v1444
  %v1580 = vunpack.c.l.b16 %v1445
  %v1581 = vunpack.c.l.b16 %v1446
  %v1582 = vunpack.c.l.b16 %v1447
  %v1583 = vunpack.c.l.b16 %v1448
  %v1584 = vunpack.c.l.b16 %v1449
  %v1585 = vunpack.c.l.b16 %v1450
  %v1586 = vunpack.c.l.b16 %v1451
  %v1587 = vunpack.c.l.b16 %v1452
  %v1588 = vunpack.c.l.b16 %v1453
  %v1589 = vunpack.c.l.b16 %v1454
  %v1590 = vunpack.c.l.b16 %v1455
  %v1591 = vunpack.c.l.b16 %v1456
  %v1592 = vunpack.c.l.b16 %v1457
  %v1593 = vunpack.c.l.b16 %v1458
  %v1594 = vpack.c.b16 %v1531, %v1530
  %v1595 = vpack.c.b16 %v1533, %v1532
  %v1596 = vpack.c.b16 %v1535, %v1534
  %v1597 = vpack.c.b16 %v1537, %v1536
  %v1598 = vpack.c.b16 %v1539, %v1538
  %v1599 = vpack.c.b16 %v1541, %v1540
  %v1600 = vpack.c.b16 %v1543, %v1542
  %v1601 = vpack.c.b16 %v1545, %v1544
  %v1602 = vpack.c.b16 %v1547, %v1546
  %v1603 = vpack.c.b16 %v1549, %v1548
  %v1604 = vpack.c.b16 %v1551, %v1550
  %v1605 = vpack.c.b16 %v1553, %v1552
  %v1606 = vpack.c.b16 %v1555, %v1554
  %v1607 = vpack.c.b16 %v1557, %v1556
  %v1608 = vpack.c.b16 %v1559, %v1558
  %v1609 = vpack.c.b16 %v1561, %v1560
  %v1610 = vpack.c.b16 %v1563, %v1562
  %v1611 = vpack.c.b16 %v1565, %v1564
  %v1612 = vpack.c.b16 %v1567, %v1566
  %v1613 = vpack.c.b16 %v1569, %v1568
  %v1614 = vpack.c.b16 %v1571, %v1570
  %v1615 = vpack.c.b16 %v1573, %v1572
  %v1616 = vpack.c.b16 %v1575, %v1574
  %v1617 = vpack.c.b16 %v1577, %v1576
  %v1618 = vpack.c.b16 %v1579, %v1578
  %v1619 = vpack.c.b16 %v1581, %v1580
  %v1620 = vpack.c.b16 %v1583, %v1582
  %v1621 = vpack.c.b16 %v1585, %v1584
  %v1622 = vpack.c.b16 %v1587, %v1586
  %v1623 = vpack.c.b16 %v1589, %v1588
  %v1624 = vpack.c.b16 %v1591, %v1590
  %v1625 = vpack.c.b16 %v1593, %v1592
  %1658 = vmatprep.subr.bf16.mxu0 0
  %1659 = vmatpush1.bf16.msra.mxu0 %v1594
  %1660 = vmatprep.subr.bf16.mxu0 0
  %1661 = vmatpush1.bf16.msra.mxu0 %v1595
  %1662 = vmatprep.subr.bf16.mxu0 0
  %1663 = vmatpush1.bf16.msra.mxu0 %v1596
  %1664 = vmatprep.subr.bf16.mxu0 0
  %1665 = vmatpush1.bf16.msra.mxu0 %v1597
  %1666 = vmatprep.subr.bf16.mxu0 0
  %1667 = vmatpush1.bf16.msra.mxu0 %v1598
  %1668 = vmatprep.subr.bf16.mxu0 0
  %1669 = vmatpush1.bf16.msra.mxu0 %v1599
  %1670 = vmatprep.subr.bf16.mxu0 0
  %1671 = vmatpush1.bf16.msra.mxu0 %v1600
  %1672 = vmatprep.subr.bf16.mxu0 0
  %1673 = vmatpush1.bf16.msra.mxu0 %v1601
  %1674 = vmatprep.subr.bf16.mxu0 0
  %1675 = vmatpush1.bf16.msra.mxu0 %v1602
  %1676 = vmatprep.subr.bf16.mxu0 0
  %1677 = vmatpush1.bf16.msra.mxu0 %v1603
  %1678 = vmatprep.subr.bf16.mxu0 0
  %1679 = vmatpush1.bf16.msra.mxu0 %v1604
  %1680 = vmatprep.subr.bf16.mxu0 0
  %1681 = vmatpush1.bf16.msra.mxu0 %v1605
  %1682 = vmatprep.subr.bf16.mxu0 0
  %1683 = vmatpush1.bf16.msra.mxu0 %v1606
  %1684 = vmatprep.subr.bf16.mxu0 0
  %1685 = vmatpush1.bf16.msra.mxu0 %v1607
  %1686 = vmatprep.subr.bf16.mxu0 0
  %1687 = vmatpush1.bf16.msra.mxu0 %v1608
  %1688 = vmatprep.subr.bf16.mxu0 0
  %1689 = vmatpush1.bf16.msra.mxu0 %v1609
  %1690 = vmatprep.mubr.bf16.mxu0 %v1392
  %1691 = vmatmul.mubr.bf16.gmra.mrb[0].mxu0 %v1391
  %v1692 = vpop.f32.mrb[0].mxu0
  %v1693 = vadd.f32 %v1464, %v1692
  %v1694 = vpop.f32.mrb[0].mxu0
  %v1695 = vpop.f32.mrb[0].mxu0
  %v1696 = vpop.f32.mrb[0].mxu0
  %1697 = vdwg.mxu0
  %1698 = vmatprep.subr.bf16.mxu0 0
  %1699 = vmatpush1.bf16.msra.mxu0 %v1610
  %1700 = vmatprep.subr.bf16.mxu0 0
  %1701 = vmatpush1.bf16.msra.mxu0 %v1611
  %1702 = vmatprep.subr.bf16.mxu0 0
  %1703 = vmatpush1.bf16.msra.mxu0 %v1612
  %1704 = vmatprep.subr.bf16.mxu0 0
  %1705 = vmatpush1.bf16.msra.mxu0 %v1613
  %1706 = vmatprep.subr.bf16.mxu0 0
  %1707 = vmatpush1.bf16.msra.mxu0 %v1614
  %1708 = vmatprep.subr.bf16.mxu0 0
  %1709 = vmatpush1.bf16.msra.mxu0 %v1615
  %1710 = vmatprep.subr.bf16.mxu0 0
  %1711 = vmatpush1.bf16.msra.mxu0 %v1616
  %1712 = vmatprep.subr.bf16.mxu0 0
  %1713 = vmatpush1.bf16.msra.mxu0 %v1617
  %1714 = vmatprep.subr.bf16.mxu0 0
  %1715 = vmatpush1.bf16.msra.mxu0 %v1618
  %1716 = vmatprep.subr.bf16.mxu0 0
  %1717 = vmatpush1.bf16.msra.mxu0 %v1619
  %1718 = vmatprep.subr.bf16.mxu0 0
  %1719 = vmatpush1.bf16.msra.mxu0 %v1620
  %1720 = vmatprep.subr.bf16.mxu0 0
  %1721 = vmatpush1.bf16.msra.mxu0 %v1621
  %1722 = vmatprep.subr.bf16.mxu0 0
  %1723 = vmatpush1.bf16.msra.mxu0 %v1622
  %1724 = vmatprep.subr.bf16.mxu0 0
  %1725 = vmatpush1.bf16.msra.mxu0 %v1623
  %1726 = vmatprep.subr.bf16.mxu0 0
  %1727 = vmatpush1.bf16.msra.mxu0 %v1624
  %1728 = vmatprep.subr.bf16.mxu0 0
  %1729 = vmatpush1.bf16.msra.mxu0 %v1625
  %1730 = vmatprep.mubr.bf16.mxu0 %v1394
  %1731 = vmatmul.mubr.bf16.gmra.mrb[0].mxu0 %v1393
  %v1732 = vpop.f32.mrb[0].mxu0
  %v1733 = vadd.f32 %v1693, %v1732
  %v1734 = vpop.f32.mrb[0].mxu0
  %v1735 = vpop.f32.mrb[0].mxu0
  %v1736 = vpop.f32.mrb[0].mxu0
  %1737 = vdwg.mxu0
  %1738 = vst [vmem:[%s9] sm:$0xff] %v1733
  // Predicated region
  $region38: #{conv_model_forward.3} parent=0 // pred_check
    _
  $region39: #{conv_model_forward.3} parent=0 // pred_check_branch
    %1740 = sbr.rel (0) target = $region41
  $region40: #{conv_model_forward.3} parent=0 // pred_region
    _
  $region41: #{conv_model_forward.3} parent=0 // pred_fallthru
    _
  // Predicated region
  $region42: #{conv_model_forward.3} parent=0 // pred_check
    _
  $region43: #{conv_model_forward.3} parent=0 // pred_check_branch
    %1742 = sbr.rel (0) target = $region45
  $region44: #{conv_model_forward.3} parent=0 // pred_region
    _
  $region45: #{conv_model_forward.3} parent=0 // pred_fallthru
    _

</llo_original>
